<compile_context>
chip_gen: v7x
topology: tpu7x:2x2x1
jax: 0.10.0
libtpu: 0.0.40
codegen_flags: <defaults>
</compile_context>

<pallas_src>
import functools

import jax
import jax.numpy as jnp
from jax.experimental import pallas as pl
from jax.experimental.pallas import tpu as pltpu

LANE = 128
SUBLANE = 8


def _round_up(x, m):
    return (x + m - 1) // m * m


def _kano_siams_kernel(
    x_ref,                                       # (2*TB, F): [x1 tile; x2 tile]
    w_enc_ref, b_enc_ref,                        # encoder dense projection
    w_f1_ref, b_f1_ref, w_f2_ref, b_f2_ref,      # shared molecule_encoder.ffn
    w_rc1_ref, b_rc1_ref, w_rc2_ref, b_rc2_ref,  # fused reg|cls decoder heads
    mol_ref,                                     # (TB, 2*H):     [mol1 | mol2]
    out_ref,                                     # (TB, 4*O_pad): [o1|o2|oreg|ocls]
):
    tb = x_ref.shape[0] // 2
    h = w_enc_ref.shape[1]
    o_pad = w_f2_ref.shape[1]

    # --- encoder on the pre-stacked [x1; x2] tile: one full-width MXU matmul.
    x = x_ref[...]                                                     # (2TB, F)
    mol = jnp.dot(x, w_enc_ref[...], preferred_element_type=jnp.float32)
    mol = jnp.maximum(mol + b_enc_ref[...], 0.0)                       # (2TB, H)
    mol1 = mol[:tb]
    mol2 = mol[tb:]

    # --- shared molecule_encoder.ffn (Dropout->Linear->ReLU->Dropout->Linear,
    # eval mode => dropout identity), on both molecules at once.
    z = jnp.dot(mol, w_f1_ref[...], preferred_element_type=jnp.float32)
    z = jnp.maximum(z + b_f1_ref[...], 0.0)                            # (2TB, FFN)
    out12 = jnp.dot(z, w_f2_ref[...], preferred_element_type=jnp.float32)
    out12 = out12 + b_f2_ref[...]                                      # (2TB, Op)

    # --- siamese difference + fused reg|cls heads (first layers concatenated
    # along N, second layers block-diagonal) -> one (TB, 2*Op) result slab.
    siams = mol1 - mol2
    zz = jnp.dot(siams, w_rc1_ref[...], preferred_element_type=jnp.float32)
    zz = jnp.maximum(zz + b_rc1_ref[...], 0.0)                         # (TB, 2*FFN)
    out_rc = jnp.dot(zz, w_rc2_ref[...], preferred_element_type=jnp.float32)
    out_rc = out_rc + b_rc2_ref[...]                                   # (TB, 2*Op)

    # --- consolidated, lane-dense output slabs (all slice offsets 128-aligned)
    mol_ref[:, :h] = mol1
    mol_ref[:, h:] = mol2
    out_ref[:, :o_pad] = out12[:tb]
    out_ref[:, o_pad:2 * o_pad] = out12[tb:]
    out_ref[:, 2 * o_pad:] = out_rc


def kano_siams_forward(x1, x2, params, *, tb_max=256):
    f32 = jnp.float32
    B, feat = x1.shape
    H = params["w_enc"].shape[1]
    FFN = params["w_f1"].shape[1]
    O = params["w_f2"].shape[1]
    O_pad = _round_up(O, LANE)

    def pad_cols(w, b, n_pad):
        n = w.shape[1]
        if n == n_pad:
            return w, b
        return (jnp.pad(w, ((0, 0), (0, n_pad - n))),
                jnp.pad(b, ((0, 0), (0, n_pad - n))))

    # Lane-dense (zero-padded) head weights; zero padding keeps the real
    # output columns exact.
    w_f2, b_f2 = pad_cols(params["w_f2"], params["b_f2"], O_pad)
    w_r2, b_r2 = pad_cols(params["w_r2"], params["b_r2"], O_pad)
    w_c2, b_c2 = pad_cols(params["w_c2"], params["b_c2"], O_pad)

    # Fuse reg|cls decoder heads: first layers along N, second layers as a
    # block-diagonal matrix so one matmul produces [out_reg | out_cls].
    w_rc1 = jnp.concatenate([params["w_r1"], params["w_c1"]], axis=1)   # (H, 2*FFN)
    b_rc1 = jnp.concatenate([params["b_r1"], params["b_c1"]], axis=1)
    zero = jnp.zeros((FFN, O_pad), f32)
    w_rc2 = jnp.concatenate(
        [jnp.concatenate([w_r2, zero], axis=1),
         jnp.concatenate([zero, w_c2], axis=1)], axis=0)                # (2*FFN, 2*Op)
    b_rc2 = jnp.concatenate([b_r2, b_c2], axis=1)

    # Batch tiling: TB is a multiple of the f32 sublane tile; pad B up to a
    # multiple of TB (padded rows are zeros and are sliced off afterwards).
    TB = min(_round_up(B, SUBLANE), _round_up(tb_max, SUBLANE))
    B_pad = _round_up(B, TB)
    if B_pad != B:
        pad = ((0, B_pad - B), (0, 0))
        x1 = jnp.pad(x1, pad)
        x2 = jnp.pad(x2, pad)
    n_tiles = B_pad // TB
    grid = (n_tiles,)

    # Interleave x1/x2 per batch tile so each grid step reads ONE contiguous
    # (2*TB, F) block: rows [x1 tile i ; x2 tile i].
    x_stacked = jnp.concatenate(
        [x1.reshape(n_tiles, TB, feat), x2.reshape(n_tiles, TB, feat)],
        axis=1,
    ).reshape(2 * B_pad, feat)

    weights = (
        params["w_enc"], params["b_enc"],
        params["w_f1"], params["b_f1"], w_f2, b_f2,
        w_rc1, b_rc1, w_rc2, b_rc2,
    )

    def resident_spec(arr):
        nd = arr.ndim
        return pl.BlockSpec(arr.shape, lambda i, _nd=nd: (0,) * _nd)

    in_specs = ([pl.BlockSpec((2 * TB, feat), lambda i: (i, 0))]
                + [resident_spec(w) for w in weights])
    out_specs = (pl.BlockSpec((TB, 2 * H), lambda i: (i, 0)),
                 pl.BlockSpec((TB, 4 * O_pad), lambda i: (i, 0)))
    out_shapes = (
        jax.ShapeDtypeStruct((B_pad, 2 * H), f32),      # [mol1 | mol2]
        jax.ShapeDtypeStruct((B_pad, 4 * O_pad), f32),  # [o1 | o2 | oreg | ocls]
    )

    flops = 2 * B_pad * (
        2 * feat * H                          # encoder on stacked [x1; x2]
        + 2 * H * FFN + 2 * FFN * O_pad       # shared ffn on stacked mol
        + H * 2 * FFN + 2 * FFN * 2 * O_pad   # fused reg|cls heads
    )
    bytes_accessed = 4 * (
        2 * B_pad * feat
        + sum(int(w.size) for w in weights)
        + B_pad * (2 * H + 4 * O_pad)
    )
    cost = pl.CostEstimate(flops=flops, transcendentals=0,
                           bytes_accessed=bytes_accessed)

    mol_slab, out_slab = pl.pallas_call(
        _kano_siams_kernel,
        out_shape=out_shapes,
        grid=grid,
        in_specs=in_specs,
        out_specs=out_specs,
        compiler_params=pltpu.CompilerParams(
            dimension_semantics=("parallel",),
            vmem_limit_bytes=32 * 1024 * 1024,
        ),
        cost_estimate=cost,
    )(x_stacked, *weights)

    mol1 = mol_slab[:B, :H]
    mol2 = mol_slab[:B, H:]
    out1 = out_slab[:B, :O]
    out2 = out_slab[:B, O_pad:O_pad + O]
    out_reg = out_slab[:B, 2 * O_pad:2 * O_pad + O]
    out_cls = out_slab[:B, 3 * O_pad:3 * O_pad + O]
    return out1, out2, out_reg, out_cls, mol1, mol2


def init_params(key, feat_dim, hidden, ffn_hidden, out_dim):
    ks = jax.random.split(key, 7)

    def lin(k, fan_in, fan_out):
        scale = 1.0 / jnp.sqrt(fan_in)
        kw, kb = jax.random.split(k)
        w = jax.random.uniform(kw, (fan_in, fan_out), jnp.float32, -scale, scale)
        b = jax.random.uniform(kb, (1, fan_out), jnp.float32, -scale, scale)
        return w, b

    p = {}
    p["w_enc"], p["b_enc"] = lin(ks[0], feat_dim, hidden)
    p["w_f1"], p["b_f1"] = lin(ks[1], hidden, ffn_hidden)
    p["w_f2"], p["b_f2"] = lin(ks[2], ffn_hidden, out_dim)
    p["w_r1"], p["b_r1"] = lin(ks[3], hidden, ffn_hidden)
    p["w_r2"], p["b_r2"] = lin(ks[4], ffn_hidden, out_dim)
    p["w_c1"], p["b_c1"] = lin(ks[5], hidden, ffn_hidden)
    p["w_c2"], p["b_c2"] = lin(ks[6], ffn_hidden, out_dim)
    return p


def reference_forward(x1, x2, p):
    def encode(x):
        return jnp.maximum(x @ p["w_enc"] + p["b_enc"], 0.0)

    def ffn(h, w1, b1, w2, b2):
        z = jnp.maximum(h @ w1 + b1, 0.0)
        return z @ w2 + b2

    mol1, mol2 = encode(x1), encode(x2)
    o1 = ffn(mol1, p["w_f1"], p["b_f1"], p["w_f2"], p["b_f2"])
    o2 = ffn(mol2, p["w_f1"], p["b_f1"], p["w_f2"], p["b_f2"])
    s = mol1 - mol2
    oreg = ffn(s, p["w_r1"], p["b_r1"], p["w_r2"], p["b_r2"])
    ocls = ffn(s, p["w_c1"], p["b_c1"], p["w_c2"], p["b_c2"])
    return o1, o2, oreg, ocls, mol1, mol2


if __name__ == "__main__":
    B, FEAT, HIDDEN, FFN_HIDDEN, OUT = 64, 64, 128, 128, 8

    key = jax.random.PRNGKey(0)
    k_x1, k_x2, k_p = jax.random.split(key, 3)

    x1 = jax.random.normal(k_x1, (B, FEAT), jnp.float32)  # featurized smiles_1
    x2 = jax.random.normal(k_x2, (B, FEAT), jnp.float32)  # featurized smiles_2
    params = init_params(k_p, FEAT, HIDDEN, FFN_HIDDEN, OUT)

    # tb_max=32 -> batch grid of 2 tiles so the pipeline is exercised.
    fwd = jax.jit(functools.partial(kano_siams_forward, tb_max=32))
    outs = jax.block_until_ready(fwd(x1, x2, params))

    refs = reference_forward(x1, x2, params)
    names = ("output1", "output2", "output_reg", "output_cls", "mol1", "mol2")
    for name, got, want in zip(names, outs, refs):
        assert got.shape == want.shape, (name, got.shape, want.shape)
        assert jnp.allclose(got, want, atol=1e-3, rtol=1e-3), name

    # mirrors: ([output1, output2, output_reg, output_cls], [mol1, mol2])
    result = ([outs[0], outs[1], outs[2], outs[3]], [outs[4], outs[5]])
    jax.block_until_ready(result)
    print("KERNEL_OK")
</pallas_src>

<mosaic_0001>
module attributes {stable_mosaic.version = 11 : i64} {
  func.func @_kano_siams_kernel(%arg0: i32, %arg1: memref<64x64xf32, #tpu.memory_space<vmem>>, %arg2: memref<64x128xf32, #tpu.memory_space<vmem>>, %arg3: memref<1x128xf32, #tpu.memory_space<vmem>>, %arg4: memref<128x128xf32, #tpu.memory_space<vmem>>, %arg5: memref<1x128xf32, #tpu.memory_space<vmem>>, %arg6: memref<128x128xf32, #tpu.memory_space<vmem>>, %arg7: memref<1x128xf32, #tpu.memory_space<vmem>>, %arg8: memref<128x256xf32, #tpu.memory_space<vmem>>, %arg9: memref<1x256xf32, #tpu.memory_space<vmem>>, %arg10: memref<256x256xf32, #tpu.memory_space<vmem>>, %arg11: memref<1x256xf32, #tpu.memory_space<vmem>>, %arg12: memref<32x256xf32, #tpu.memory_space<vmem>>, %arg13: memref<32x512xf32, #tpu.memory_space<vmem>>) attributes {dimension_semantics = [#tpu.dimension_semantics<parallel>], iteration_bounds = array<i64: 2>, scalar_prefetch = 0 : i64, scratch_operands = 0 : i64, tpu.core_type = #tpu.core_type<tc>, window_params = [{transform_indices = @transform_0, window_bounds = array<i64: 64, 64>}, {pipeline_mode = #tpu.pipeline_mode<synchronous>, transform_indices = @transform_1, window_bounds = array<i64: 64, 128>}, {pipeline_mode = #tpu.pipeline_mode<synchronous>, transform_indices = @transform_2, window_bounds = array<i64: 1, 128>}, {pipeline_mode = #tpu.pipeline_mode<synchronous>, transform_indices = @transform_3, window_bounds = array<i64: 128, 128>}, {pipeline_mode = #tpu.pipeline_mode<synchronous>, transform_indices = @transform_4, window_bounds = array<i64: 1, 128>}, {pipeline_mode = #tpu.pipeline_mode<synchronous>, transform_indices = @transform_5, window_bounds = array<i64: 128, 128>}, {pipeline_mode = #tpu.pipeline_mode<synchronous>, transform_indices = @transform_6, window_bounds = array<i64: 1, 128>}, {pipeline_mode = #tpu.pipeline_mode<synchronous>, transform_indices = @transform_7, window_bounds = array<i64: 128, 256>}, {pipeline_mode = #tpu.pipeline_mode<synchronous>, transform_indices = @transform_8, window_bounds = array<i64: 1, 256>}, {pipeline_mode = #tpu.pipeline_mode<synchronous>, transform_indices = @transform_9, window_bounds = array<i64: 256, 256>}, {pipeline_mode = #tpu.pipeline_mode<synchronous>, transform_indices = @transform_10, window_bounds = array<i64: 1, 256>}, {transform_indices = @transform_11, window_bounds = array<i64: 32, 256>}, {transform_indices = @transform_12, window_bounds = array<i64: 32, 512>}]} {
    %c0 = arith.constant 0 : index
    %c0_0 = arith.constant 0 : index
    %0 = vector.load %arg1[%c0, %c0_0] : memref<64x64xf32, #tpu.memory_space<vmem>>, vector<64x64xf32>
    %c0_1 = arith.constant 0 : index
    %c0_2 = arith.constant 0 : index
    %1 = vector.load %arg2[%c0_1, %c0_2] : memref<64x128xf32, #tpu.memory_space<vmem>>, vector<64x128xf32>
    %cst = arith.constant dense<0.000000e+00> : vector<64x128xf32>
    %2 = tpu.matmul %0, %1, %cst {dimension_numbers = #tpu.dot_dimension_numbers<[1], [0], [0], [1], [0, 0, 1, 1], [], []>} : vector<64x64xf32>, vector<64x128xf32>, vector<64x128xf32> -> vector<64x128xf32>
    %c0_3 = arith.constant 0 : index
    %c0_4 = arith.constant 0 : index
    %3 = vector.load %arg3[%c0_3, %c0_4] : memref<1x128xf32, #tpu.memory_space<vmem>>, vector<1x128xf32>
    %4 = vector.broadcast %3 : vector<1x128xf32> to vector<64x128xf32>
    %5 = arith.addf %2, %4 : vector<64x128xf32>
    %cst_5 = arith.constant 0.000000e+00 : f32
    %6 = vector.broadcast %cst_5 : f32 to vector<64x128xf32>
    %7 = arith.maximumf %5, %6 : vector<64x128xf32>
    %8 = vector.extract_strided_slice %7 {offsets = [0, 0], sizes = [32, 128], strides = [1, 1]} : vector<64x128xf32> to vector<32x128xf32>
    %9 = vector.extract_strided_slice %7 {offsets = [32, 0], sizes = [32, 128], strides = [1, 1]} : vector<64x128xf32> to vector<32x128xf32>
    %c0_6 = arith.constant 0 : index
    %c0_7 = arith.constant 0 : index
    %10 = vector.load %arg4[%c0_6, %c0_7] : memref<128x128xf32, #tpu.memory_space<vmem>>, vector<128x128xf32>
    %cst_8 = arith.constant dense<0.000000e+00> : vector<64x128xf32>
    %11 = tpu.matmul %7, %10, %cst_8 {dimension_numbers = #tpu.dot_dimension_numbers<[1], [0], [0], [1], [0, 0, 1, 1], [], []>} : vector<64x128xf32>, vector<128x128xf32>, vector<64x128xf32> -> vector<64x128xf32>
    %c0_9 = arith.constant 0 : index
    %c0_10 = arith.constant 0 : index
    %12 = vector.load %arg5[%c0_9, %c0_10] : memref<1x128xf32, #tpu.memory_space<vmem>>, vector<1x128xf32>
    %13 = vector.broadcast %12 : vector<1x128xf32> to vector<64x128xf32>
    %14 = arith.addf %11, %13 : vector<64x128xf32>
    %cst_11 = arith.constant 0.000000e+00 : f32
    %15 = vector.broadcast %cst_11 : f32 to vector<64x128xf32>
    %16 = arith.maximumf %14, %15 : vector<64x128xf32>
    %c0_12 = arith.constant 0 : index
    %c0_13 = arith.constant 0 : index
    %17 = vector.load %arg6[%c0_12, %c0_13] : memref<128x128xf32, #tpu.memory_space<vmem>>, vector<128x128xf32>
    %cst_14 = arith.constant dense<0.000000e+00> : vector<64x128xf32>
    %18 = tpu.matmul %16, %17, %cst_14 {dimension_numbers = #tpu.dot_dimension_numbers<[1], [0], [0], [1], [0, 0, 1, 1], [], []>} : vector<64x128xf32>, vector<128x128xf32>, vector<64x128xf32> -> vector<64x128xf32>
    %c0_15 = arith.constant 0 : index
    %c0_16 = arith.constant 0 : index
    %19 = vector.load %arg7[%c0_15, %c0_16] : memref<1x128xf32, #tpu.memory_space<vmem>>, vector<1x128xf32>
    %20 = vector.broadcast %19 : vector<1x128xf32> to vector<64x128xf32>
    %21 = arith.addf %18, %20 : vector<64x128xf32>
    %22 = arith.subf %8, %9 : vector<32x128xf32>
    %c0_17 = arith.constant 0 : index
    %c0_18 = arith.constant 0 : index
    %23 = vector.load %arg8[%c0_17, %c0_18] : memref<128x256xf32, #tpu.memory_space<vmem>>, vector<128x256xf32>
    %cst_19 = arith.constant dense<0.000000e+00> : vector<32x256xf32>
    %24 = tpu.matmul %22, %23, %cst_19 {dimension_numbers = #tpu.dot_dimension_numbers<[1], [0], [0], [1], [0, 0, 1, 1], [], []>} : vector<32x128xf32>, vector<128x256xf32>, vector<32x256xf32> -> vector<32x256xf32>
    %c0_20 = arith.constant 0 : index
    %c0_21 = arith.constant 0 : index
    %25 = vector.load %arg9[%c0_20, %c0_21] : memref<1x256xf32, #tpu.memory_space<vmem>>, vector<1x256xf32>
    %26 = vector.broadcast %25 : vector<1x256xf32> to vector<32x256xf32>
    %27 = arith.addf %24, %26 : vector<32x256xf32>
    %cst_22 = arith.constant 0.000000e+00 : f32
    %28 = vector.broadcast %cst_22 : f32 to vector<32x256xf32>
    %29 = arith.maximumf %27, %28 : vector<32x256xf32>
    %c0_23 = arith.constant 0 : index
    %c0_24 = arith.constant 0 : index
    %30 = vector.load %arg10[%c0_23, %c0_24] : memref<256x256xf32, #tpu.memory_space<vmem>>, vector<256x256xf32>
    %cst_25 = arith.constant dense<0.000000e+00> : vector<32x256xf32>
    %31 = tpu.matmul %29, %30, %cst_25 {dimension_numbers = #tpu.dot_dimension_numbers<[1], [0], [0], [1], [0, 0, 1, 1], [], []>} : vector<32x256xf32>, vector<256x256xf32>, vector<32x256xf32> -> vector<32x256xf32>
    %c0_26 = arith.constant 0 : index
    %c0_27 = arith.constant 0 : index
    %32 = vector.load %arg11[%c0_26, %c0_27] : memref<1x256xf32, #tpu.memory_space<vmem>>, vector<1x256xf32>
    %33 = vector.broadcast %32 : vector<1x256xf32> to vector<32x256xf32>
    %34 = arith.addf %31, %33 : vector<32x256xf32>
    %c0_28 = arith.constant 0 : index
    %c0_29 = arith.constant 0 : index
    %35 = vector.load %arg12[%c0_28, %c0_29] : memref<32x256xf32, #tpu.memory_space<vmem>>, vector<32x128xf32>
    tpu.vector_store %arg12[%c0_28, %c0_29], %8 {strides = array<i32>} : memref<32x256xf32, #tpu.memory_space<vmem>>, vector<32x128xf32>,
    %c0_30 = arith.constant 0 : index
    %c128 = arith.constant 128 : index
    %36 = vector.load %arg12[%c0_30, %c128] : memref<32x256xf32, #tpu.memory_space<vmem>>, vector<32x128xf32>
    tpu.vector_store %arg12[%c0_30, %c128], %9 {strides = array<i32>} : memref<32x256xf32, #tpu.memory_space<vmem>>, vector<32x128xf32>,
    %37 = vector.extract_strided_slice %21 {offsets = [0, 0], sizes = [32, 128], strides = [1, 1]} : vector<64x128xf32> to vector<32x128xf32>
    %c0_31 = arith.constant 0 : index
    %c0_32 = arith.constant 0 : index
    %38 = vector.load %arg13[%c0_31, %c0_32] : memref<32x512xf32, #tpu.memory_space<vmem>>, vector<32x128xf32>
    tpu.vector_store %arg13[%c0_31, %c0_32], %37 {strides = array<i32>} : memref<32x512xf32, #tpu.memory_space<vmem>>, vector<32x128xf32>,
    %39 = vector.extract_strided_slice %21 {offsets = [32, 0], sizes = [32, 128], strides = [1, 1]} : vector<64x128xf32> to vector<32x128xf32>
    %c0_33 = arith.constant 0 : index
    %c128_34 = arith.constant 128 : index
    %40 = vector.load %arg13[%c0_33, %c128_34] : memref<32x512xf32, #tpu.memory_space<vmem>>, vector<32x128xf32>
    tpu.vector_store %arg13[%c0_33, %c128_34], %39 {strides = array<i32>} : memref<32x512xf32, #tpu.memory_space<vmem>>, vector<32x128xf32>,
    %c0_35 = arith.constant 0 : index
    %c256 = arith.constant 256 : index
    %41 = vector.load %arg13[%c0_35, %c256] : memref<32x512xf32, #tpu.memory_space<vmem>>, vector<32x256xf32>
    tpu.vector_store %arg13[%c0_35, %c256], %34 {strides = array<i32>} : memref<32x512xf32, #tpu.memory_space<vmem>>, vector<32x256xf32>,
    return
  }
  func.func @transform_0(%arg0: i32) -> (i32, i32) {
    %c0_i32 = arith.constant 0 : i32
    %c0_i32_0 = arith.constant 0 : i32
    return %arg0, %c0_i32 : i32, i32
  }
  func.func @transform_1(%arg0: i32) -> (i32, i32) {
    %c0_i32 = arith.constant 0 : i32
    %c0_i32_0 = arith.constant 0 : i32
    %c0_i32_1 = arith.constant 0 : i32
    return %c0_i32, %c0_i32_0 : i32, i32
  }
  func.func @transform_2(%arg0: i32) -> (i32, i32) {
    %c0_i32 = arith.constant 0 : i32
    %c0_i32_0 = arith.constant 0 : i32
    %c0_i32_1 = arith.constant 0 : i32
    return %c0_i32, %c0_i32_0 : i32, i32
  }
  func.func @transform_3(%arg0: i32) -> (i32, i32) {
    %c0_i32 = arith.constant 0 : i32
    %c0_i32_0 = arith.constant 0 : i32
    %c0_i32_1 = arith.constant 0 : i32
    return %c0_i32, %c0_i32_0 : i32, i32
  }
  func.func @transform_4(%arg0: i32) -> (i32, i32) {
    %c0_i32 = arith.constant 0 : i32
    %c0_i32_0 = arith.constant 0 : i32
    %c0_i32_1 = arith.constant 0 : i32
    return %c0_i32, %c0_i32_0 : i32, i32
  }
  func.func @transform_5(%arg0: i32) -> (i32, i32) {
    %c0_i32 = arith.constant 0 : i32
    %c0_i32_0 = arith.constant 0 : i32
    %c0_i32_1 = arith.constant 0 : i32
    return %c0_i32, %c0_i32_0 : i32, i32
  }
  func.func @transform_6(%arg0: i32) -> (i32, i32) {
    %c0_i32 = arith.constant 0 : i32
    %c0_i32_0 = arith.constant 0 : i32
    %c0_i32_1 = arith.constant 0 : i32
    return %c0_i32, %c0_i32_0 : i32, i32
  }
  func.func @transform_7(%arg0: i32) -> (i32, i32) {
    %c0_i32 = arith.constant 0 : i32
    %c0_i32_0 = arith.constant 0 : i32
    %c0_i32_1 = arith.constant 0 : i32
    return %c0_i32, %c0_i32_0 : i32, i32
  }
  func.func @transform_8(%arg0: i32) -> (i32, i32) {
    %c0_i32 = arith.constant 0 : i32
    %c0_i32_0 = arith.constant 0 : i32
    %c0_i32_1 = arith.constant 0 : i32
    return %c0_i32, %c0_i32_0 : i32, i32
  }
  func.func @transform_9(%arg0: i32) -> (i32, i32) {
    %c0_i32 = arith.constant 0 : i32
    %c0_i32_0 = arith.constant 0 : i32
    %c0_i32_1 = arith.constant 0 : i32
    return %c0_i32, %c0_i32_0 : i32, i32
  }
  func.func @transform_10(%arg0: i32) -> (i32, i32) {
    %c0_i32 = arith.constant 0 : i32
    %c0_i32_0 = arith.constant 0 : i32
    %c0_i32_1 = arith.constant 0 : i32
    return %c0_i32, %c0_i32_0 : i32, i32
  }
  func.func @transform_11(%arg0: i32) -> (i32, i32) {
    %c0_i32 = arith.constant 0 : i32
    %c0_i32_0 = arith.constant 0 : i32
    return %arg0, %c0_i32 : i32, i32
  }
  func.func @transform_12(%arg0: i32) -> (i32, i32) {
    %c0_i32 = arith.constant 0 : i32
    %c0_i32_0 = arith.constant 0 : i32
    return %arg0, %c0_i32 : i32, i32
  }
}

</mosaic_0001>

<llo_original>
// kernel: kano_siams_forward.1
$region0: #{kano_siams_forward.1}
  #allocation0 [shape = 'u32[]', space=smem, size = 0x4, offset = 0x4, fixed_abs, tag = 'smem constant byte address 0x4 - core index']
  #allocation1 [shape = 'u32[144,128]{1,0:T(1,128)}', space=vmem, size = 0x12000, scoped, tag = 'internal scratch']
  %s0 = inlined_call_operand.vmem [shape: f32[128,64], index: 0, kind: input, shape index: {}]
  %s1 = inlined_call_operand.vmem [shape: f32[64,128], index: 1, kind: input, shape index: {}]
  %s2 = inlined_call_operand.vmem [shape: f32[1,128], index: 2, kind: input, shape index: {}]
  %s3 = inlined_call_operand.vmem [shape: f32[128,128], index: 3, kind: input, shape index: {}]
  %s4 = inlined_call_operand.vmem [shape: f32[1,128], index: 4, kind: input, shape index: {}]
  %s5 = inlined_call_operand.vmem [shape: f32[128,128], index: 5, kind: input, shape index: {}]
  %s6 = inlined_call_operand.vmem [shape: f32[1,128], index: 6, kind: input, shape index: {}]
  %s7 = inlined_call_operand.vmem [shape: f32[128,256], index: 7, kind: input, shape index: {}]
  %s8 = inlined_call_operand.vmem [shape: f32[1,256], index: 8, kind: input, shape index: {}]
  %s9 = inlined_call_operand.vmem [shape: f32[256,256], index: 9, kind: input, shape index: {}]
  %s10 = inlined_call_operand.vmem [shape: f32[1,256], index: 10, kind: input, shape index: {}]
  %s11 = inlined_call_operand.vmem [shape: f32[64,256], index: 11, kind: output, shape index: {0}]
  %s12 = inlined_call_operand.vmem [shape: f32[64,512], index: 12, kind: output, shape index: {1}]
  %13 = xla_tuple %s11, %s12
  %s14 = sld [smem:[#allocation0]]
  $region85: #{kano_siams_forward.1} parent=0
    _
  %s16 = ssub.s32 1, %s14
  %s17 = scalar_select 0, %s16, %s14
  loop: start=0, step=1, limit=4
  $region2: #{kano_siams_forward.1} parent=0 // loop_pre_header
    _
  $region3: #{kano_siams_forward.1} parent=0 // loop_header
    %s19 = sphi 0, %s23
    %p20 = scmp.ge.s32.totalorder %s19, 4
    %s29 = sphi 0, %s31
    %s32 = sphi 0, %s29
    %s33 = sphi 0, %s32
    %s49 = sphi 0, %s33
    %s53 = sphi 0, %s53
    %s55 = sphi 0, %s53
    %s56 = sphi 0, %s55
    %s70 = sphi 0, %s56
    %s74 = sphi 0, %s74
    %s76 = sphi 0, %s74
    %s77 = sphi 0, %s76
    %s91 = sphi 0, %s77
    %s95 = sphi 0, %s95
    %s97 = sphi 0, %s95
    %s98 = sphi 0, %s97
    %s112 = sphi 0, %s98
    %s116 = sphi 0, %s116
    %s118 = sphi 0, %s116
    %s119 = sphi 0, %s118
    %s133 = sphi 0, %s119
    %s137 = sphi 0, %s137
    %s139 = sphi 0, %s137
    %s140 = sphi 0, %s139
    %s154 = sphi 0, %s140
    %s158 = sphi 0, %s158
    %s160 = sphi 0, %s158
    %s161 = sphi 0, %s160
    %s175 = sphi 0, %s161
    %s179 = sphi 0, %s179
    %s181 = sphi 0, %s179
    %s182 = sphi 0, %s181
    %s196 = sphi 0, %s182
    %s200 = sphi 0, %s200
    %s202 = sphi 0, %s200
    %s203 = sphi 0, %s202
    %s217 = sphi 0, %s203
    %s221 = sphi 0, %s221
    %s223 = sphi 0, %s221
    %s224 = sphi 0, %s223
    %s238 = sphi 0, %s224
    %s242 = sphi 0, %s242
    %s244 = sphi 0, %s242
    %s245 = sphi 0, %s244
    %s259 = sphi 0, %s245
    %s265 = sphi 0, %s267
    %s268 = sphi 0, %s265
    %s269 = sphi 0, %s268
    %s285 = sphi 0, %s269
    %s291 = sphi 0, %s293
    %s294 = sphi 0, %s291
    %s295 = sphi 0, %s294
    %s311 = sphi 0, %s295
  $region4: #{kano_siams_forward.1} parent=0 // loop_header_branch
    %22 = sbr.rel (%p20) target = $region8
  $region5: #{kano_siams_forward.1} parent=0 // loop_body
    %s24 = ssub.s32 %s19, 1
    %s25 = ssub.s32 %s19, 2
    %s26 = sadd.s32 %s19, 1
    %s27 = ssub.s32 %s19, %s26
    %p28 = scmp.eq.s32.totalorder %s27, 0
    %s30 = sadd.s32 %s29, 1
    %s31 = scalar_select %p28, %s29, %s30
    %p34 = pneg %p28
    %p35 = scmp.eq.s32.totalorder %s19, 1
    %p36 = por %p34, %p35
    %p37 = scmp.ne.s32.totalorder %s29, %s32
    %p38 = scmp.eq.s32.totalorder %s19, 0
    %p39 = por %p37, %p38
    %p40 = scmp.ne.s32.totalorder %s29, %s32
    %p41 = scmp.eq.s32.totalorder %s24, 1
    %p42 = por %p40, %p41
    %p43 = scmp.ne.s32.totalorder %s32, %s33
    %p44 = scmp.eq.s32.totalorder %s24, 0
    %p45 = por %p43, %p44
    %p46 = scmp.ne.s32.totalorder %s32, %s33
    %p47 = scmp.eq.s32.totalorder %s25, 1
    %p48 = por %p46, %p47
    %p50 = scmp.ne.s32.totalorder %s33, %s49
    %p51 = scmp.eq.s32.totalorder %s25, 0
    %p52 = por %p50, %p51
    %s54 = sadd.s32 %s53, 1
    %p57 = scmp.eq.s32.totalorder %s19, 1
    %p58 = scmp.ne.s32.totalorder %s53, %s55
    %p59 = scmp.eq.s32.totalorder %s19, 0
    %p60 = por %p58, %p59
    %p61 = scmp.ne.s32.totalorder %s53, %s55
    %p62 = scmp.eq.s32.totalorder %s24, 1
    %p63 = por %p61, %p62
    %p64 = scmp.ne.s32.totalorder %s55, %s56
    %p65 = scmp.eq.s32.totalorder %s24, 0
    %p66 = por %p64, %p65
    %p67 = scmp.ne.s32.totalorder %s55, %s56
    %p68 = scmp.eq.s32.totalorder %s25, 1
    %p69 = por %p67, %p68
    %p71 = scmp.ne.s32.totalorder %s56, %s70
    %p72 = scmp.eq.s32.totalorder %s25, 0
    %p73 = por %p71, %p72
    %s75 = sadd.s32 %s74, 1
    %p78 = scmp.eq.s32.totalorder %s19, 1
    %p79 = scmp.ne.s32.totalorder %s74, %s76
    %p80 = scmp.eq.s32.totalorder %s19, 0
    %p81 = por %p79, %p80
    %p82 = scmp.ne.s32.totalorder %s74, %s76
    %p83 = scmp.eq.s32.totalorder %s24, 1
    %p84 = por %p82, %p83
    %p85 = scmp.ne.s32.totalorder %s76, %s77
    %p86 = scmp.eq.s32.totalorder %s24, 0
    %p87 = por %p85, %p86
    %p88 = scmp.ne.s32.totalorder %s76, %s77
    %p89 = scmp.eq.s32.totalorder %s25, 1
    %p90 = por %p88, %p89
    %p92 = scmp.ne.s32.totalorder %s77, %s91
    %p93 = scmp.eq.s32.totalorder %s25, 0
    %p94 = por %p92, %p93
    %s96 = sadd.s32 %s95, 1
    %p99 = scmp.eq.s32.totalorder %s19, 1
    %p100 = scmp.ne.s32.totalorder %s95, %s97
    %p101 = scmp.eq.s32.totalorder %s19, 0
    %p102 = por %p100, %p101
    %p103 = scmp.ne.s32.totalorder %s95, %s97
    %p104 = scmp.eq.s32.totalorder %s24, 1
    %p105 = por %p103, %p104
    %p106 = scmp.ne.s32.totalorder %s97, %s98
    %p107 = scmp.eq.s32.totalorder %s24, 0
    %p108 = por %p106, %p107
    %p109 = scmp.ne.s32.totalorder %s97, %s98
    %p110 = scmp.eq.s32.totalorder %s25, 1
    %p111 = por %p109, %p110
    %p113 = scmp.ne.s32.totalorder %s98, %s112
    %p114 = scmp.eq.s32.totalorder %s25, 0
    %p115 = por %p113, %p114
    %s117 = sadd.s32 %s116, 1
    %p120 = scmp.eq.s32.totalorder %s19, 1
    %p121 = scmp.ne.s32.totalorder %s116, %s118
    %p122 = scmp.eq.s32.totalorder %s19, 0
    %p123 = por %p121, %p122
    %p124 = scmp.ne.s32.totalorder %s116, %s118
    %p125 = scmp.eq.s32.totalorder %s24, 1
    %p126 = por %p124, %p125
    %p127 = scmp.ne.s32.totalorder %s118, %s119
    %p128 = scmp.eq.s32.totalorder %s24, 0
    %p129 = por %p127, %p128
    %p130 = scmp.ne.s32.totalorder %s118, %s119
    %p131 = scmp.eq.s32.totalorder %s25, 1
    %p132 = por %p130, %p131
    %p134 = scmp.ne.s32.totalorder %s119, %s133
    %p135 = scmp.eq.s32.totalorder %s25, 0
    %p136 = por %p134, %p135
    %s138 = sadd.s32 %s137, 1
    %p141 = scmp.eq.s32.totalorder %s19, 1
    %p142 = scmp.ne.s32.totalorder %s137, %s139
    %p143 = scmp.eq.s32.totalorder %s19, 0
    %p144 = por %p142, %p143
    %p145 = scmp.ne.s32.totalorder %s137, %s139
    %p146 = scmp.eq.s32.totalorder %s24, 1
    %p147 = por %p145, %p146
    %p148 = scmp.ne.s32.totalorder %s139, %s140
    %p149 = scmp.eq.s32.totalorder %s24, 0
    %p150 = por %p148, %p149
    %p151 = scmp.ne.s32.totalorder %s139, %s140
    %p152 = scmp.eq.s32.totalorder %s25, 1
    %p153 = por %p151, %p152
    %p155 = scmp.ne.s32.totalorder %s140, %s154
    %p156 = scmp.eq.s32.totalorder %s25, 0
    %p157 = por %p155, %p156
    %s159 = sadd.s32 %s158, 1
    %p162 = scmp.eq.s32.totalorder %s19, 1
    %p163 = scmp.ne.s32.totalorder %s158, %s160
    %p164 = scmp.eq.s32.totalorder %s19, 0
    %p165 = por %p163, %p164
    %p166 = scmp.ne.s32.totalorder %s158, %s160
    %p167 = scmp.eq.s32.totalorder %s24, 1
    %p168 = por %p166, %p167
    %p169 = scmp.ne.s32.totalorder %s160, %s161
    %p170 = scmp.eq.s32.totalorder %s24, 0
    %p171 = por %p169, %p170
    %p172 = scmp.ne.s32.totalorder %s160, %s161
    %p173 = scmp.eq.s32.totalorder %s25, 1
    %p174 = por %p172, %p173
    %p176 = scmp.ne.s32.totalorder %s161, %s175
    %p177 = scmp.eq.s32.totalorder %s25, 0
    %p178 = por %p176, %p177
    %s180 = sadd.s32 %s179, 1
    %p183 = scmp.eq.s32.totalorder %s19, 1
    %p184 = scmp.ne.s32.totalorder %s179, %s181
    %p185 = scmp.eq.s32.totalorder %s19, 0
    %p186 = por %p184, %p185
    %p187 = scmp.ne.s32.totalorder %s179, %s181
    %p188 = scmp.eq.s32.totalorder %s24, 1
    %p189 = por %p187, %p188
    %p190 = scmp.ne.s32.totalorder %s181, %s182
    %p191 = scmp.eq.s32.totalorder %s24, 0
    %p192 = por %p190, %p191
    %p193 = scmp.ne.s32.totalorder %s181, %s182
    %p194 = scmp.eq.s32.totalorder %s25, 1
    %p195 = por %p193, %p194
    %p197 = scmp.ne.s32.totalorder %s182, %s196
    %p198 = scmp.eq.s32.totalorder %s25, 0
    %p199 = por %p197, %p198
    %s201 = sadd.s32 %s200, 1
    %p204 = scmp.eq.s32.totalorder %s19, 1
    %p205 = scmp.ne.s32.totalorder %s200, %s202
    %p206 = scmp.eq.s32.totalorder %s19, 0
    %p207 = por %p205, %p206
    %p208 = scmp.ne.s32.totalorder %s200, %s202
    %p209 = scmp.eq.s32.totalorder %s24, 1
    %p210 = por %p208, %p209
    %p211 = scmp.ne.s32.totalorder %s202, %s203
    %p212 = scmp.eq.s32.totalorder %s24, 0
    %p213 = por %p211, %p212
    %p214 = scmp.ne.s32.totalorder %s202, %s203
    %p215 = scmp.eq.s32.totalorder %s25, 1
    %p216 = por %p214, %p215
    %p218 = scmp.ne.s32.totalorder %s203, %s217
    %p219 = scmp.eq.s32.totalorder %s25, 0
    %p220 = por %p218, %p219
    %s222 = sadd.s32 %s221, 1
    %p225 = scmp.eq.s32.totalorder %s19, 1
    %p226 = scmp.ne.s32.totalorder %s221, %s223
    %p227 = scmp.eq.s32.totalorder %s19, 0
    %p228 = por %p226, %p227
    %p229 = scmp.ne.s32.totalorder %s221, %s223
    %p230 = scmp.eq.s32.totalorder %s24, 1
    %p231 = por %p229, %p230
    %p232 = scmp.ne.s32.totalorder %s223, %s224
    %p233 = scmp.eq.s32.totalorder %s24, 0
    %p234 = por %p232, %p233
    %p235 = scmp.ne.s32.totalorder %s223, %s224
    %p236 = scmp.eq.s32.totalorder %s25, 1
    %p237 = por %p235, %p236
    %p239 = scmp.ne.s32.totalorder %s224, %s238
    %p240 = scmp.eq.s32.totalorder %s25, 0
    %p241 = por %p239, %p240
    %s243 = sadd.s32 %s242, 1
    %p246 = scmp.eq.s32.totalorder %s19, 1
    %p247 = scmp.ne.s32.totalorder %s242, %s244
    %p248 = scmp.eq.s32.totalorder %s19, 0
    %p249 = por %p247, %p248
    %p250 = scmp.ne.s32.totalorder %s242, %s244
    %p251 = scmp.eq.s32.totalorder %s24, 1
    %p252 = por %p250, %p251
    %p253 = scmp.ne.s32.totalorder %s244, %s245
    %p254 = scmp.eq.s32.totalorder %s24, 0
    %p255 = por %p253, %p254
    %p256 = scmp.ne.s32.totalorder %s244, %s245
    %p257 = scmp.eq.s32.totalorder %s25, 1
    %p258 = por %p256, %p257
    %p260 = scmp.ne.s32.totalorder %s245, %s259
    %p261 = scmp.eq.s32.totalorder %s25, 0
    %p262 = por %p260, %p261
    %s263 = ssub.s32 %s19, %s26
    %p264 = scmp.eq.s32.totalorder %s263, 0
    %s266 = sadd.s32 %s265, 1
    %s267 = scalar_select %p264, %s265, %s266
    %p270 = pneg %p264
    %p271 = scmp.eq.s32.totalorder %s19, 1
    %p272 = por %p270, %p271
    %p273 = scmp.ne.s32.totalorder %s265, %s268
    %p274 = scmp.eq.s32.totalorder %s19, 0
    %p275 = por %p273, %p274
    %p276 = scmp.ne.s32.totalorder %s265, %s268
    %p277 = scmp.eq.s32.totalorder %s24, 1
    %p278 = por %p276, %p277
    %p279 = scmp.ne.s32.totalorder %s268, %s269
    %p280 = scmp.eq.s32.totalorder %s24, 0
    %p281 = por %p279, %p280
    %p282 = scmp.ne.s32.totalorder %s268, %s269
    %p283 = scmp.eq.s32.totalorder %s25, 1
    %p284 = por %p282, %p283
    %p286 = scmp.ne.s32.totalorder %s269, %s285
    %p287 = scmp.eq.s32.totalorder %s25, 0
    %p288 = por %p286, %p287
    %s289 = ssub.s32 %s19, %s26
    %p290 = scmp.eq.s32.totalorder %s289, 0
    %s292 = sadd.s32 %s291, 1
    %s293 = scalar_select %p290, %s291, %s292
    %p296 = pneg %p290
    %p297 = scmp.eq.s32.totalorder %s19, 1
    %p298 = por %p296, %p297
    %p299 = scmp.ne.s32.totalorder %s291, %s294
    %p300 = scmp.eq.s32.totalorder %s19, 0
    %p301 = por %p299, %p300
    %p302 = scmp.ne.s32.totalorder %s291, %s294
    %p303 = scmp.eq.s32.totalorder %s24, 1
    %p304 = por %p302, %p303
    %p305 = scmp.ne.s32.totalorder %s294, %s295
    %p306 = scmp.eq.s32.totalorder %s24, 0
    %p307 = por %p305, %p306
    %p308 = scmp.ne.s32.totalorder %s294, %s295
    %p309 = scmp.eq.s32.totalorder %s25, 1
    %p310 = por %p308, %p309
    %p312 = scmp.ne.s32.totalorder %s295, %s311
    %p313 = scmp.eq.s32.totalorder %s25, 0
    %p314 = por %p312, %p313
    %p315 = scmp.le.s32.totalorder 1, %s19
    %p316 = scmp.lt.s32.totalorder %s19, 3
    %p317 = pnand %p315, %p316
    %p318 = pneg %p317
    // Predicated region
    $region9: #{kano_siams_forward.1} parent=5 // pred_check
      _
    $region10: #{kano_siams_forward.1} parent=5 // pred_check_branch
      %320 = sbr.rel (%p317) target = $region12
    $region11: #{kano_siams_forward.1} parent=5 // pred_region
      %s321 = ssub.s32 %s19, 1
      // Predicated region
      $region13: #{kano_siams_forward.1} parent=11 // pred_check
        %p322 = pneg %p66
      $region14: #{kano_siams_forward.1} parent=11 // pred_check_branch
        %324 = sbr.rel (%p322) target = $region16
      $region15: #{kano_siams_forward.1} parent=11 // pred_region
        _
      $region16: #{kano_siams_forward.1} parent=11 // pred_fallthru
        _
      // Predicated region
      $region17: #{kano_siams_forward.1} parent=11 // pred_check
        %p325 = pneg %p87
      $region18: #{kano_siams_forward.1} parent=11 // pred_check_branch
        %327 = sbr.rel (%p325) target = $region20
      $region19: #{kano_siams_forward.1} parent=11 // pred_region
        _
      $region20: #{kano_siams_forward.1} parent=11 // pred_fallthru
        _
      // Predicated region
      $region21: #{kano_siams_forward.1} parent=11 // pred_check
        %p328 = pneg %p108
      $region22: #{kano_siams_forward.1} parent=11 // pred_check_branch
        %330 = sbr.rel (%p328) target = $region24
      $region23: #{kano_siams_forward.1} parent=11 // pred_region
        _
      $region24: #{kano_siams_forward.1} parent=11 // pred_fallthru
        _
      // Predicated region
      $region25: #{kano_siams_forward.1} parent=11 // pred_check
        %p331 = pneg %p129
      $region26: #{kano_siams_forward.1} parent=11 // pred_check_branch
        %333 = sbr.rel (%p331) target = $region28
      $region27: #{kano_siams_forward.1} parent=11 // pred_region
        _
      $region28: #{kano_siams_forward.1} parent=11 // pred_fallthru
        _
      // Predicated region
      $region29: #{kano_siams_forward.1} parent=11 // pred_check
        %p334 = pneg %p150
      $region30: #{kano_siams_forward.1} parent=11 // pred_check_branch
        %336 = sbr.rel (%p334) target = $region32
      $region31: #{kano_siams_forward.1} parent=11 // pred_region
        _
      $region32: #{kano_siams_forward.1} parent=11 // pred_fallthru
        _
      // Predicated region
      $region33: #{kano_siams_forward.1} parent=11 // pred_check
        %p337 = pneg %p171
      $region34: #{kano_siams_forward.1} parent=11 // pred_check_branch
        %339 = sbr.rel (%p337) target = $region36
      $region35: #{kano_siams_forward.1} parent=11 // pred_region
        _
      $region36: #{kano_siams_forward.1} parent=11 // pred_fallthru
        _
      // Predicated region
      $region37: #{kano_siams_forward.1} parent=11 // pred_check
        %p340 = pneg %p192
      $region38: #{kano_siams_forward.1} parent=11 // pred_check_branch
        %342 = sbr.rel (%p340) target = $region40
      $region39: #{kano_siams_forward.1} parent=11 // pred_region
        _
      $region40: #{kano_siams_forward.1} parent=11 // pred_fallthru
        _
      // Predicated region
      $region41: #{kano_siams_forward.1} parent=11 // pred_check
        %p343 = pneg %p213
      $region42: #{kano_siams_forward.1} parent=11 // pred_check_branch
        %345 = sbr.rel (%p343) target = $region44
      $region43: #{kano_siams_forward.1} parent=11 // pred_region
        _
      $region44: #{kano_siams_forward.1} parent=11 // pred_fallthru
        _
      // Predicated region
      $region45: #{kano_siams_forward.1} parent=11 // pred_check
        %p346 = pneg %p234
      $region46: #{kano_siams_forward.1} parent=11 // pred_check_branch
        %348 = sbr.rel (%p346) target = $region48
      $region47: #{kano_siams_forward.1} parent=11 // pred_region
        _
      $region48: #{kano_siams_forward.1} parent=11 // pred_fallthru
        _
      // Predicated region
      $region49: #{kano_siams_forward.1} parent=11 // pred_check
        %p349 = pneg %p255
      $region50: #{kano_siams_forward.1} parent=11 // pred_check_branch
        %351 = sbr.rel (%p349) target = $region52
      $region51: #{kano_siams_forward.1} parent=11 // pred_region
        _
      $region52: #{kano_siams_forward.1} parent=11 // pred_fallthru
        _
    $region12: #{kano_siams_forward.1} parent=5 // pred_fallthru
      _
    %p352 = scmp.lt.s32.totalorder %s19, 2
    // Predicated region
    $region53: #{kano_siams_forward.1} parent=5 // pred_check
      %p353 = pneg %p352
    $region54: #{kano_siams_forward.1} parent=5 // pred_check_branch
      %355 = sbr.rel (%p353) target = $region56
    $region55: #{kano_siams_forward.1} parent=5 // pred_region
      // Predicated region
      $region57: #{kano_siams_forward.1} parent=55 // pred_check
        %p356 = pneg %p39
      $region58: #{kano_siams_forward.1} parent=55 // pred_check_branch
        %358 = sbr.rel (%p356) target = $region60
      $region59: #{kano_siams_forward.1} parent=55 // pred_region
        %s359 = smul.u32 8, %s19
        %p360 = scmp.lt.s32.totalorder %s359, 15
        %s361 = scalar_select %p360, %s359, 15
        %s362 = smul.addr %s361, 8
        %s363 = scalar_lea.vmem %s0, %s362
        %s364 = smul.u32 8, %s19
      $region60: #{kano_siams_forward.1} parent=55 // pred_fallthru
        _
    $region56: #{kano_siams_forward.1} parent=5 // pred_fallthru
      _
    %p365 = scmp.le.s32.totalorder 1, %s19
    %p366 = scmp.lt.s32.totalorder %s19, 3
    %p367 = pnand %p365, %p366
    %p368 = pneg %p367
    // Predicated region
    $region61: #{kano_siams_forward.1} parent=5 // pred_check
      _
    $region62: #{kano_siams_forward.1} parent=5 // pred_check_branch
      %370 = sbr.rel (%p367) target = $region64
    $region63: #{kano_siams_forward.1} parent=5 // pred_region
      %s371 = ssub.s32 %s19, 1
      %s372 = smul.u32 8, %s24
      %p373 = scmp.lt.s32.totalorder %s372, 15
      %s374 = scalar_select %p373, %s372, 15
      %s375 = smul.addr %s374, 8
      %s376 = scalar_lea.vmem %s0, %s375
      %p377 = pneg %p45
      %p378 = pneg %p42
      %p379 = pneg %p66
      %p380 = pneg %p63
      %p381 = pneg %p87
      %p382 = pneg %p84
      %p383 = pneg %p108
      %p384 = pneg %p105
      %p385 = pneg %p129
      %p386 = pneg %p126
      %p387 = pneg %p150
      %p388 = pneg %p147
      %p389 = pneg %p171
      %p390 = pneg %p168
      %p391 = pneg %p192
      %p392 = pneg %p189
      %p393 = pneg %p213
      %p394 = pneg %p210
      %p395 = pneg %p234
      %p396 = pneg %p231
      %p397 = pneg %p255
      %p398 = pneg %p252
      %p399 = pneg %p281
      %p400 = pneg %p278
      %s401 = smul.u32 4, %s24
      %p402 = scmp.lt.s32.totalorder %s401, 7
      %s403 = scalar_select %p402, %s401, 7
      %s404 = smul.addr %s403, 2
      %s405 = smul.addr %s404, 8
      %s406 = scalar_lea.vmem %s11, %s405
      %p407 = pneg %p307
      %p408 = pneg %p304
      %s409 = smul.u32 4, %s24
      %p410 = scmp.lt.s32.totalorder %s409, 7
      %s411 = scalar_select %p410, %s409, 7
      %s412 = smul.addr %s411, 4
      %s413 = smul.addr %s412, 8
      %s414 = scalar_lea.vmem %s12, %s413
      %s415 = smul.u32 8, %s24
      %p416 = scmp.lt.s32.totalorder %s415, 15
      %s417 = scalar_select %p416, %s415, 15
      %s418 = smul.addr %s417, 8
      %s419 = scalar_lea.vmem %s0, %s418
      %s420 = smul.u32 8, %s24
      %s421 = smul.u32 4, %s24
      %p422 = scmp.lt.s32.totalorder %s421, 7
      %s423 = scalar_select %p422, %s421, 7
      %s424 = smul.addr %s423, 2
      %s425 = smul.addr %s424, 8
      %s426 = scalar_lea.vmem %s11, %s425
      %s427 = smul.u32 4, %s24
      %s428 = smul.u32 4, %s24
      %p429 = scmp.lt.s32.totalorder %s428, 7
      %s430 = scalar_select %p429, %s428, 7
      %s431 = smul.addr %s430, 4
      %s432 = smul.addr %s431, 8
      %s433 = scalar_lea.vmem %s12, %s432
      %s434 = smul.u32 4, %s24
      %v435 = vld [vmem:[%s419] sm:$0xff]
      %v436 = vld [vmem:[%s419 + $0x8] sm:$0xff]
      %v437 = vld [vmem:[%s419 + $0x10] sm:$0xff]
      %v438 = vld [vmem:[%s419 + $0x18] sm:$0xff]
      %v439 = vld [vmem:[%s419 + $0x20] sm:$0xff]
      %v440 = vld [vmem:[%s419 + $0x28] sm:$0xff]
      %v441 = vld [vmem:[%s419 + $0x30] sm:$0xff]
      %v442 = vld [vmem:[%s419 + $0x38] sm:$0xff]
      %v443 = vld [vmem:[%s1] sm:$0xff]
      %v444 = vld [vmem:[%s1 + $0x8] sm:$0xff]
      %v445 = vld [vmem:[%s1 + $0x10] sm:$0xff]
      %v446 = vld [vmem:[%s1 + $0x18] sm:$0xff]
      %v447 = vld [vmem:[%s1 + $0x20] sm:$0xff]
      %v448 = vld [vmem:[%s1 + $0x28] sm:$0xff]
      %v449 = vld [vmem:[%s1 + $0x30] sm:$0xff]
      %v450 = vld [vmem:[%s1 + $0x38] sm:$0xff]
      %v451 = vld [vmem:[%s2] sm:$0x1]
      %v453 = vlaneseq
      %v454 = vshrl.u32 %v453, 7
      %v455 = vsub.s32 0, %v454
      %v456 = vrot.slane %v451, %v455
      %vm458 = vcmask 523264
      %v460 = vsel %vm458, %v435, 0
      %v463 = vsel %vm458, %v436, 0
      %v466 = vsel %vm458, %v437, 0
      %v469 = vsel %vm458, %v438, 0
      %v472 = vsel %vm458, %v439, 0
      %v475 = vsel %vm458, %v440, 0
      %v478 = vsel %vm458, %v441, 0
      %v481 = vsel %vm458, %v442, 0
      %483 = vmatprep.subr.mxu0 0.0
      %484 = vmatpush1.msra.mxu0 %v443
      %485 = vmatprep.subr.mxu0 0.0
      %486 = vmatpush1.msra.mxu0 %v444
      %487 = vmatprep.subr.mxu0 0.0
      %488 = vmatpush1.msra.mxu0 %v445
      %489 = vmatprep.subr.mxu0 0.0
      %490 = vmatpush1.msra.mxu0 %v446
      %491 = vmatprep.subr.mxu0 0.0
      %492 = vmatpush1.msra.mxu0 %v447
      %493 = vmatprep.subr.mxu0 0.0
      %494 = vmatpush1.msra.mxu0 %v448
      %495 = vmatprep.subr.mxu0 0.0
      %496 = vmatpush1.msra.mxu0 %v449
      %497 = vmatprep.subr.mxu0 0.0
      %498 = vmatpush1.msra.mxu0 %v450
      %499 = vmatprep.subr.mxu0 0.0
      %500 = vmatpush1.msra.mxu0 0.0
      %501 = vmatprep.subr.mxu0 0.0
      %502 = vmatpush1.msra.mxu0 0.0
      %503 = vmatprep.subr.mxu0 0.0
      %504 = vmatpush1.msra.mxu0 0.0
      %505 = vmatprep.subr.mxu0 0.0
      %506 = vmatpush1.msra.mxu0 0.0
      %507 = vmatprep.subr.mxu0 0.0
      %508 = vmatpush1.msra.mxu0 0.0
      %509 = vmatprep.subr.mxu0 0.0
      %510 = vmatpush1.msra.mxu0 0.0
      %511 = vmatprep.subr.mxu0 0.0
      %512 = vmatpush1.msra.mxu0 0.0
      %513 = vmatprep.subr.mxu0 0.0
      %514 = vmatpush1.msra.mxu0 0.0
      %515 = vmatprep.subr.mxu0 0.0
      %516 = vmatpush1.msra.mxu0 0.0
      %517 = vmatprep.subr.mxu0 0.0
      %518 = vmatpush1.msra.mxu0 0.0
      %519 = vmatprep.subr.mxu0 0.0
      %520 = vmatpush1.msra.mxu0 0.0
      %521 = vmatprep.subr.mxu0 0.0
      %522 = vmatpush1.msra.mxu0 0.0
      %523 = vmatprep.subr.mxu0 0.0
      %524 = vmatpush1.msra.mxu0 0.0
      %525 = vmatprep.subr.mxu0 0.0
      %526 = vmatpush1.msra.mxu0 0.0
      %527 = vmatprep.subr.mxu0 0.0
      %528 = vmatpush1.msra.mxu0 0.0
      %529 = vmatprep.subr.mxu0 0.0
      %530 = vmatpush1.msra.mxu0 0.0
      %531 = vmatprep.subr.mxu0 0.0
      %532 = vmatpush1.msra.mxu0 0.0
      %533 = vmatprep.subr.mxu0 0.0
      %534 = vmatpush1.msra.mxu0 0.0
      %535 = vmatprep.subr.mxu0 0.0
      %536 = vmatpush1.msra.mxu0 0.0
      %537 = vmatprep.subr.mxu0 0.0
      %538 = vmatpush1.msra.mxu0 0.0
      %539 = vmatprep.subr.mxu0 0.0
      %540 = vmatpush1.msra.mxu0 0.0
      %541 = vmatprep.subr.mxu0 0.0
      %542 = vmatpush1.msra.mxu0 0.0
      %543 = vmatprep.subr.mxu0 0.0
      %544 = vmatpush1.msra.mxu0 0.0
      %545 = vmatprep.subr.mxu0 0.0
      %546 = vmatpush1.msra.mxu0 0.0
      %547 = vmatprep.mubr.f32.mxu0 0.0
      %548 = vmatmul.mubr.f32.gmra.mrb[0].mxu0 %v460
      %v549 = vpop.f32.mrb[0].mxu0
      %v550 = vadd.f32 %v456, %v549
      %v551 = vpop.f32.mrb[0].mxu0
      %552 = vmatprep.mubr.f32.mxu0 0.0
      %553 = vmatmul.mubr.f32.gmra.mrb[0].mxu0 %v463
      %v554 = vpop.f32.mrb[0].mxu0
      %v555 = vadd.f32 %v456, %v554
      %v556 = vpop.f32.mrb[0].mxu0
      %557 = vmatprep.mubr.f32.mxu0 0.0
      %558 = vmatmul.mubr.f32.gmra.mrb[0].mxu0 %v466
      %v559 = vpop.f32.mrb[0].mxu0
      %v560 = vadd.f32 %v456, %v559
      %v561 = vpop.f32.mrb[0].mxu0
      %562 = vmatprep.mubr.f32.mxu0 0.0
      %563 = vmatmul.mubr.f32.gmra.mrb[0].mxu0 %v469
      %v564 = vpop.f32.mrb[0].mxu0
      %v565 = vadd.f32 %v456, %v564
      %v566 = vpop.f32.mrb[0].mxu0
      %567 = vmatprep.mubr.f32.mxu0 0.0
      %568 = vmatmul.mubr.f32.gmra.mrb[0].mxu0 %v472
      %v569 = vpop.f32.mrb[0].mxu0
      %v570 = vadd.f32 %v456, %v569
      %v571 = vpop.f32.mrb[0].mxu0
      %572 = vmatprep.mubr.f32.mxu0 0.0
      %573 = vmatmul.mubr.f32.gmra.mrb[0].mxu0 %v475
      %v574 = vpop.f32.mrb[0].mxu0
      %v575 = vadd.f32 %v456, %v574
      %v576 = vpop.f32.mrb[0].mxu0
      %577 = vmatprep.mubr.f32.mxu0 0.0
      %578 = vmatmul.mubr.f32.gmra.mrb[0].mxu0 %v478
      %v579 = vpop.f32.mrb[0].mxu0
      %v580 = vadd.f32 %v456, %v579
      %v581 = vpop.f32.mrb[0].mxu0
      %582 = vmatprep.mubr.f32.mxu0 0.0
      %583 = vmatmul.mubr.f32.gmra.mrb[0].mxu0 %v481
      %v584 = vpop.f32.mrb[0].mxu0
      %v585 = vadd.f32 %v456, %v584
      %v586 = vpop.f32.mrb[0].mxu0
      %587 = vdwg.mxu0
      %v588 = vmax.f32 %v550, 0.0
      %v589 = vmax.f32 %v555, 0.0
      %v590 = vmax.f32 %v560, 0.0
      %v591 = vmax.f32 %v565, 0.0
      %v592 = vmax.f32 %v570, 0.0
      %v593 = vmax.f32 %v575, 0.0
      %v594 = vmax.f32 %v580, 0.0
      %v595 = vmax.f32 %v585, 0.0
      %v596 = vld [vmem:[%s3] sm:$0xff]
      %v597 = vld [vmem:[%s3 + $0x8] sm:$0xff]
      %v598 = vld [vmem:[%s3 + $0x10] sm:$0xff]
      %v599 = vld [vmem:[%s3 + $0x18] sm:$0xff]
      %v600 = vld [vmem:[%s3 + $0x20] sm:$0xff]
      %v601 = vld [vmem:[%s3 + $0x28] sm:$0xff]
      %v602 = vld [vmem:[%s3 + $0x30] sm:$0xff]
      %v603 = vld [vmem:[%s3 + $0x38] sm:$0xff]
      %v604 = vld [vmem:[%s3 + $0x40] sm:$0xff]
      %v605 = vld [vmem:[%s3 + $0x48] sm:$0xff]
      %v606 = vld [vmem:[%s3 + $0x50] sm:$0xff]
      %v607 = vld [vmem:[%s3 + $0x58] sm:$0xff]
      %v608 = vld [vmem:[%s3 + $0x60] sm:$0xff]
      %v609 = vld [vmem:[%s3 + $0x68] sm:$0xff]
      %v610 = vld [vmem:[%s3 + $0x70] sm:$0xff]
      %v611 = vld [vmem:[%s3 + $0x78] sm:$0xff]
      %v612 = vld [vmem:[%s4] sm:$0x1]
      %v614 = vlaneseq
      %v615 = vshrl.u32 %v614, 7
      %v616 = vsub.s32 0, %v615
      %v617 = vrot.slane %v612, %v616
      %619 = vmatprep.subr.mxu0 0.0
      %620 = vmatpush1.msra.mxu0 %v596
      %621 = vmatprep.subr.mxu0 0.0
      %622 = vmatpush1.msra.mxu0 %v597
      %623 = vmatprep.subr.mxu0 0.0
      %624 = vmatpush1.msra.mxu0 %v598
      %625 = vmatprep.subr.mxu0 0.0
      %626 = vmatpush1.msra.mxu0 %v599
      %627 = vmatprep.subr.mxu0 0.0
      %628 = vmatpush1.msra.mxu0 %v600
      %629 = vmatprep.subr.mxu0 0.0
      %630 = vmatpush1.msra.mxu0 %v601
      %631 = vmatprep.subr.mxu0 0.0
      %632 = vmatpush1.msra.mxu0 %v602
      %633 = vmatprep.subr.mxu0 0.0
      %634 = vmatpush1.msra.mxu0 %v603
      %635 = vmatprep.subr.mxu0 0.0
      %636 = vmatpush1.msra.mxu0 %v604
      %637 = vmatprep.subr.mxu0 0.0
      %638 = vmatpush1.msra.mxu0 %v605
      %639 = vmatprep.subr.mxu0 0.0
      %640 = vmatpush1.msra.mxu0 %v606
      %641 = vmatprep.subr.mxu0 0.0
      %642 = vmatpush1.msra.mxu0 %v607
      %643 = vmatprep.subr.mxu0 0.0
      %644 = vmatpush1.msra.mxu0 %v608
      %645 = vmatprep.subr.mxu0 0.0
      %646 = vmatpush1.msra.mxu0 %v609
      %647 = vmatprep.subr.mxu0 0.0
      %648 = vmatpush1.msra.mxu0 %v610
      %649 = vmatprep.subr.mxu0 0.0
      %650 = vmatpush1.msra.mxu0 %v611
      %651 = vmatprep.subr.mxu0 0.0
      %652 = vmatpush1.msra.mxu0 0.0
      %653 = vmatprep.subr.mxu0 0.0
      %654 = vmatpush1.msra.mxu0 0.0
      %655 = vmatprep.subr.mxu0 0.0
      %656 = vmatpush1.msra.mxu0 0.0
      %657 = vmatprep.subr.mxu0 0.0
      %658 = vmatpush1.msra.mxu0 0.0
      %659 = vmatprep.subr.mxu0 0.0
      %660 = vmatpush1.msra.mxu0 0.0
      %661 = vmatprep.subr.mxu0 0.0
      %662 = vmatpush1.msra.mxu0 0.0
      %663 = vmatprep.subr.mxu0 0.0
      %664 = vmatpush1.msra.mxu0 0.0
      %665 = vmatprep.subr.mxu0 0.0
      %666 = vmatpush1.msra.mxu0 0.0
      %667 = vmatprep.subr.mxu0 0.0
      %668 = vmatpush1.msra.mxu0 0.0
      %669 = vmatprep.subr.mxu0 0.0
      %670 = vmatpush1.msra.mxu0 0.0
      %671 = vmatprep.subr.mxu0 0.0
      %672 = vmatpush1.msra.mxu0 0.0
      %673 = vmatprep.subr.mxu0 0.0
      %674 = vmatpush1.msra.mxu0 0.0
      %675 = vmatprep.subr.mxu0 0.0
      %676 = vmatpush1.msra.mxu0 0.0
      %677 = vmatprep.subr.mxu0 0.0
      %678 = vmatpush1.msra.mxu0 0.0
      %679 = vmatprep.subr.mxu0 0.0
      %680 = vmatpush1.msra.mxu0 0.0
      %681 = vmatprep.subr.mxu0 0.0
      %682 = vmatpush1.msra.mxu0 0.0
      %683 = vmatprep.mubr.f32.mxu0 0.0
      %684 = vmatmul.mubr.f32.gmra.mrb[0].mxu0 %v588
      %v685 = vpop.f32.mrb[0].mxu0
      %v686 = vadd.f32 %v617, %v685
      %v687 = vpop.f32.mrb[0].mxu0
      %688 = vmatprep.mubr.f32.mxu0 0.0
      %689 = vmatmul.mubr.f32.gmra.mrb[0].mxu0 %v589
      %v690 = vpop.f32.mrb[0].mxu0
      %v691 = vadd.f32 %v617, %v690
      %v692 = vpop.f32.mrb[0].mxu0
      %693 = vmatprep.mubr.f32.mxu0 0.0
      %694 = vmatmul.mubr.f32.gmra.mrb[0].mxu0 %v590
      %v695 = vpop.f32.mrb[0].mxu0
      %v696 = vadd.f32 %v617, %v695
      %v697 = vpop.f32.mrb[0].mxu0
      %698 = vmatprep.mubr.f32.mxu0 0.0
      %699 = vmatmul.mubr.f32.gmra.mrb[0].mxu0 %v591
      %v700 = vpop.f32.mrb[0].mxu0
      %v701 = vadd.f32 %v617, %v700
      %v702 = vpop.f32.mrb[0].mxu0
      %703 = vmatprep.mubr.f32.mxu0 0.0
      %704 = vmatmul.mubr.f32.gmra.mrb[0].mxu0 %v592
      %v705 = vpop.f32.mrb[0].mxu0
      %v706 = vadd.f32 %v617, %v705
      %v707 = vpop.f32.mrb[0].mxu0
      %708 = vmatprep.mubr.f32.mxu0 0.0
      %709 = vmatmul.mubr.f32.gmra.mrb[0].mxu0 %v593
      %v710 = vpop.f32.mrb[0].mxu0
      %v711 = vadd.f32 %v617, %v710
      %v712 = vpop.f32.mrb[0].mxu0
      %713 = vmatprep.mubr.f32.mxu0 0.0
      %714 = vmatmul.mubr.f32.gmra.mrb[0].mxu0 %v594
      %v715 = vpop.f32.mrb[0].mxu0
      %v716 = vadd.f32 %v617, %v715
      %v717 = vpop.f32.mrb[0].mxu0
      %718 = vmatprep.mubr.f32.mxu0 0.0
      %719 = vmatmul.mubr.f32.gmra.mrb[0].mxu0 %v595
      %v720 = vpop.f32.mrb[0].mxu0
      %v721 = vadd.f32 %v617, %v720
      %v722 = vpop.f32.mrb[0].mxu0
      %723 = vdwg.mxu0
      %v724 = vmax.f32 %v686, 0.0
      %v725 = vmax.f32 %v691, 0.0
      %v726 = vmax.f32 %v696, 0.0
      %v727 = vmax.f32 %v701, 0.0
      %v728 = vmax.f32 %v706, 0.0
      %v729 = vmax.f32 %v711, 0.0
      %v730 = vmax.f32 %v716, 0.0
      %v731 = vmax.f32 %v721, 0.0
      %v732 = vld [vmem:[%s5] sm:$0xff]
      %v733 = vld [vmem:[%s5 + $0x8] sm:$0xff]
      %v734 = vld [vmem:[%s5 + $0x10] sm:$0xff]
      %v735 = vld [vmem:[%s5 + $0x18] sm:$0xff]
      %v736 = vld [vmem:[%s5 + $0x20] sm:$0xff]
      %v737 = vld [vmem:[%s5 + $0x28] sm:$0xff]
      %v738 = vld [vmem:[%s5 + $0x30] sm:$0xff]
      %v739 = vld [vmem:[%s5 + $0x38] sm:$0xff]
      %v740 = vld [vmem:[%s5 + $0x40] sm:$0xff]
      %v741 = vld [vmem:[%s5 + $0x48] sm:$0xff]
      %v742 = vld [vmem:[%s5 + $0x50] sm:$0xff]
      %v743 = vld [vmem:[%s5 + $0x58] sm:$0xff]
      %v744 = vld [vmem:[%s5 + $0x60] sm:$0xff]
      %v745 = vld [vmem:[%s5 + $0x68] sm:$0xff]
      %v746 = vld [vmem:[%s5 + $0x70] sm:$0xff]
      %v747 = vld [vmem:[%s5 + $0x78] sm:$0xff]
      %v748 = vld [vmem:[%s6] sm:$0x1]
      %v750 = vlaneseq
      %v751 = vshrl.u32 %v750, 7
      %v752 = vsub.s32 0, %v751
      %v753 = vrot.slane %v748, %v752
      %755 = vmatprep.subr.mxu0 0.0
      %756 = vmatpush1.msra.mxu0 %v732
      %757 = vmatprep.subr.mxu0 0.0
      %758 = vmatpush1.msra.mxu0 %v733
      %759 = vmatprep.subr.mxu0 0.0
      %760 = vmatpush1.msra.mxu0 %v734
      %761 = vmatprep.subr.mxu0 0.0
      %762 = vmatpush1.msra.mxu0 %v735
      %763 = vmatprep.subr.mxu0 0.0
      %764 = vmatpush1.msra.mxu0 %v736
      %765 = vmatprep.subr.mxu0 0.0
      %766 = vmatpush1.msra.mxu0 %v737
      %767 = vmatprep.subr.mxu0 0.0
      %768 = vmatpush1.msra.mxu0 %v738
      %769 = vmatprep.subr.mxu0 0.0
      %770 = vmatpush1.msra.mxu0 %v739
      %771 = vmatprep.subr.mxu0 0.0
      %772 = vmatpush1.msra.mxu0 %v740
      %773 = vmatprep.subr.mxu0 0.0
      %774 = vmatpush1.msra.mxu0 %v741
      %775 = vmatprep.subr.mxu0 0.0
      %776 = vmatpush1.msra.mxu0 %v742
      %777 = vmatprep.subr.mxu0 0.0
      %778 = vmatpush1.msra.mxu0 %v743
      %779 = vmatprep.subr.mxu0 0.0
      %780 = vmatpush1.msra.mxu0 %v744
      %781 = vmatprep.subr.mxu0 0.0
      %782 = vmatpush1.msra.mxu0 %v745
      %783 = vmatprep.subr.mxu0 0.0
      %784 = vmatpush1.msra.mxu0 %v746
      %785 = vmatprep.subr.mxu0 0.0
      %786 = vmatpush1.msra.mxu0 %v747
      %787 = vmatprep.subr.mxu0 0.0
      %788 = vmatpush1.msra.mxu0 0.0
      %789 = vmatprep.subr.mxu0 0.0
      %790 = vmatpush1.msra.mxu0 0.0
      %791 = vmatprep.subr.mxu0 0.0
      %792 = vmatpush1.msra.mxu0 0.0
      %793 = vmatprep.subr.mxu0 0.0
      %794 = vmatpush1.msra.mxu0 0.0
      %795 = vmatprep.subr.mxu0 0.0
      %796 = vmatpush1.msra.mxu0 0.0
      %797 = vmatprep.subr.mxu0 0.0
      %798 = vmatpush1.msra.mxu0 0.0
      %799 = vmatprep.subr.mxu0 0.0
      %800 = vmatpush1.msra.mxu0 0.0
      %801 = vmatprep.subr.mxu0 0.0
      %802 = vmatpush1.msra.mxu0 0.0
      %803 = vmatprep.subr.mxu0 0.0
      %804 = vmatpush1.msra.mxu0 0.0
      %805 = vmatprep.subr.mxu0 0.0
      %806 = vmatpush1.msra.mxu0 0.0
      %807 = vmatprep.subr.mxu0 0.0
      %808 = vmatpush1.msra.mxu0 0.0
      %809 = vmatprep.subr.mxu0 0.0
      %810 = vmatpush1.msra.mxu0 0.0
      %811 = vmatprep.subr.mxu0 0.0
      %812 = vmatpush1.msra.mxu0 0.0
      %813 = vmatprep.subr.mxu0 0.0
      %814 = vmatpush1.msra.mxu0 0.0
      %815 = vmatprep.subr.mxu0 0.0
      %816 = vmatpush1.msra.mxu0 0.0
      %817 = vmatprep.subr.mxu0 0.0
      %818 = vmatpush1.msra.mxu0 0.0
      %819 = vmatprep.mubr.f32.mxu0 0.0
      %820 = vmatmul.mubr.f32.gmra.mrb[0].mxu0 %v724
      %v821 = vpop.f32.mrb[0].mxu0
      %v822 = vadd.f32 %v753, %v821
      %v823 = vpop.f32.mrb[0].mxu0
      %824 = vmatprep.mubr.f32.mxu0 0.0
      %825 = vmatmul.mubr.f32.gmra.mrb[0].mxu0 %v725
      %v826 = vpop.f32.mrb[0].mxu0
      %v827 = vadd.f32 %v753, %v826
      %v828 = vpop.f32.mrb[0].mxu0
      %829 = vmatprep.mubr.f32.mxu0 0.0
      %830 = vmatmul.mubr.f32.gmra.mrb[0].mxu0 %v726
      %v831 = vpop.f32.mrb[0].mxu0
      %v832 = vadd.f32 %v753, %v831
      %v833 = vpop.f32.mrb[0].mxu0
      %834 = vmatprep.mubr.f32.mxu0 0.0
      %835 = vmatmul.mubr.f32.gmra.mrb[0].mxu0 %v727
      %v836 = vpop.f32.mrb[0].mxu0
      %v837 = vadd.f32 %v753, %v836
      %v838 = vpop.f32.mrb[0].mxu0
      %839 = vmatprep.mubr.f32.mxu0 0.0
      %840 = vmatmul.mubr.f32.gmra.mrb[0].mxu0 %v728
      %v841 = vpop.f32.mrb[0].mxu0
      %v842 = vadd.f32 %v753, %v841
      %v843 = vpop.f32.mrb[0].mxu0
      %844 = vmatprep.mubr.f32.mxu0 0.0
      %845 = vmatmul.mubr.f32.gmra.mrb[0].mxu0 %v729
      %v846 = vpop.f32.mrb[0].mxu0
      %v847 = vadd.f32 %v753, %v846
      %v848 = vpop.f32.mrb[0].mxu0
      %849 = vmatprep.mubr.f32.mxu0 0.0
      %850 = vmatmul.mubr.f32.gmra.mrb[0].mxu0 %v730
      %v851 = vpop.f32.mrb[0].mxu0
      %v852 = vadd.f32 %v753, %v851
      %v853 = vpop.f32.mrb[0].mxu0
      %854 = vmatprep.mubr.f32.mxu0 0.0
      %855 = vmatmul.mubr.f32.gmra.mrb[0].mxu0 %v731
      %v856 = vpop.f32.mrb[0].mxu0
      %v857 = vadd.f32 %v753, %v856
      %v858 = vpop.f32.mrb[0].mxu0
      %859 = vdwg.mxu0
      %v860 = vsub.f32 %v588, %v592
      %v861 = vsub.f32 %v589, %v593
      %v862 = vsub.f32 %v590, %v594
      %v863 = vsub.f32 %v591, %v595
      %v864 = vld [vmem:[%s7] sm:$0xff]
      %v865 = vld [vmem:[%s7 + $0x8] sm:$0xff]
      %v866 = vld [vmem:[%s7 + $0x10] sm:$0xff]
      %v867 = vld [vmem:[%s7 + $0x18] sm:$0xff]
      %v868 = vld [vmem:[%s7 + $0x20] sm:$0xff]
      %v869 = vld [vmem:[%s7 + $0x28] sm:$0xff]
      %v870 = vld [vmem:[%s7 + $0x30] sm:$0xff]
      %v871 = vld [vmem:[%s7 + $0x38] sm:$0xff]
      %v872 = vld [vmem:[%s7 + $0x40] sm:$0xff]
      %v873 = vld [vmem:[%s7 + $0x48] sm:$0xff]
      %v874 = vld [vmem:[%s7 + $0x50] sm:$0xff]
      %v875 = vld [vmem:[%s7 + $0x58] sm:$0xff]
      %v876 = vld [vmem:[%s7 + $0x60] sm:$0xff]
      %v877 = vld [vmem:[%s7 + $0x68] sm:$0xff]
      %v878 = vld [vmem:[%s7 + $0x70] sm:$0xff]
      %v879 = vld [vmem:[%s7 + $0x78] sm:$0xff]
      %v880 = vld [vmem:[%s7 + $0x80] sm:$0xff]
      %v881 = vld [vmem:[%s7 + $0x88] sm:$0xff]
      %v882 = vld [vmem:[%s7 + $0x90] sm:$0xff]
      %v883 = vld [vmem:[%s7 + $0x98] sm:$0xff]
      %v884 = vld [vmem:[%s7 + $0xa0] sm:$0xff]
      %v885 = vld [vmem:[%s7 + $0xa8] sm:$0xff]
      %v886 = vld [vmem:[%s7 + $0xb0] sm:$0xff]
      %v887 = vld [vmem:[%s7 + $0xb8] sm:$0xff]
      %v888 = vld [vmem:[%s7 + $0xc0] sm:$0xff]
      %v889 = vld [vmem:[%s7 + $0xc8] sm:$0xff]
      %v890 = vld [vmem:[%s7 + $0xd0] sm:$0xff]
      %v891 = vld [vmem:[%s7 + $0xd8] sm:$0xff]
      %v892 = vld [vmem:[%s7 + $0xe0] sm:$0xff]
      %v893 = vld [vmem:[%s7 + $0xe8] sm:$0xff]
      %v894 = vld [vmem:[%s7 + $0xf0] sm:$0xff]
      %v895 = vld [vmem:[%s7 + $0xf8] sm:$0xff]
      %v896 = vld [vmem:[%s8] sm:$0x3]
      %v898 = vlaneseq
      %v899 = vshrl.u32 %v898, 7
      %v900 = vsub.s32 0, %v899
      %v901 = vrot.slane %v896, %v900
      %v902 = vlaneseq
      %v903 = vshrl.u32 %v902, 7
      %v904 = vsub.s32 1, %v903
      %v905 = vrot.slane %v896, %v904
      %908 = vmatprep.subr.mxu0 %v865
      %909 = vmatpush1.msra.mxu0 %v864
      %910 = vmatprep.subr.mxu0 %v867
      %911 = vmatpush1.msra.mxu0 %v866
      %912 = vmatprep.subr.mxu0 %v869
      %913 = vmatpush1.msra.mxu0 %v868
      %914 = vmatprep.subr.mxu0 %v871
      %915 = vmatpush1.msra.mxu0 %v870
      %916 = vmatprep.subr.mxu0 %v873
      %917 = vmatpush1.msra.mxu0 %v872
      %918 = vmatprep.subr.mxu0 %v875
      %919 = vmatpush1.msra.mxu0 %v874
      %920 = vmatprep.subr.mxu0 %v877
      %921 = vmatpush1.msra.mxu0 %v876
      %922 = vmatprep.subr.mxu0 %v879
      %923 = vmatpush1.msra.mxu0 %v878
      %924 = vmatprep.subr.mxu0 %v881
      %925 = vmatpush1.msra.mxu0 %v880
      %926 = vmatprep.subr.mxu0 %v883
      %927 = vmatpush1.msra.mxu0 %v882
      %928 = vmatprep.subr.mxu0 %v885
      %929 = vmatpush1.msra.mxu0 %v884
      %930 = vmatprep.subr.mxu0 %v887
      %931 = vmatpush1.msra.mxu0 %v886
      %932 = vmatprep.subr.mxu0 %v889
      %933 = vmatpush1.msra.mxu0 %v888
      %934 = vmatprep.subr.mxu0 %v891
      %935 = vmatpush1.msra.mxu0 %v890
      %936 = vmatprep.subr.mxu0 %v893
      %937 = vmatpush1.msra.mxu0 %v892
      %938 = vmatprep.subr.mxu0 %v895
      %939 = vmatpush1.msra.mxu0 %v894
      %940 = vmatprep.subr.mxu0 0.0
      %941 = vmatpush1.msra.mxu0 0.0
      %942 = vmatprep.subr.mxu0 0.0
      %943 = vmatpush1.msra.mxu0 0.0
      %944 = vmatprep.subr.mxu0 0.0
      %945 = vmatpush1.msra.mxu0 0.0
      %946 = vmatprep.subr.mxu0 0.0
      %947 = vmatpush1.msra.mxu0 0.0
      %948 = vmatprep.subr.mxu0 0.0
      %949 = vmatpush1.msra.mxu0 0.0
      %950 = vmatprep.subr.mxu0 0.0
      %951 = vmatpush1.msra.mxu0 0.0
      %952 = vmatprep.subr.mxu0 0.0
      %953 = vmatpush1.msra.mxu0 0.0
      %954 = vmatprep.subr.mxu0 0.0
      %955 = vmatpush1.msra.mxu0 0.0
      %956 = vmatprep.subr.mxu0 0.0
      %957 = vmatpush1.msra.mxu0 0.0
      %958 = vmatprep.subr.mxu0 0.0
      %959 = vmatpush1.msra.mxu0 0.0
      %960 = vmatprep.subr.mxu0 0.0
      %961 = vmatpush1.msra.mxu0 0.0
      %962 = vmatprep.subr.mxu0 0.0
      %963 = vmatpush1.msra.mxu0 0.0
      %964 = vmatprep.subr.mxu0 0.0
      %965 = vmatpush1.msra.mxu0 0.0
      %966 = vmatprep.subr.mxu0 0.0
      %967 = vmatpush1.msra.mxu0 0.0
      %968 = vmatprep.subr.mxu0 0.0
      %969 = vmatpush1.msra.mxu0 0.0
      %970 = vmatprep.subr.mxu0 0.0
      %971 = vmatpush1.msra.mxu0 0.0
      %972 = vmatprep.mubr.f32.mxu0 0.0
      %973 = vmatmul.mubr.f32.gmra.mrb[0].mxu0 %v860
      %v974 = vpop.f32.mrb[0].mxu0
      %v975 = vadd.f32 %v901, %v974
      %v976 = vpop.f32.mrb[0].mxu0
      %v977 = vadd.f32 %v905, %v976
      %978 = vmatprep.mubr.f32.mxu0 0.0
      %979 = vmatmul.mubr.f32.gmra.mrb[0].mxu0 %v861
      %v980 = vpop.f32.mrb[0].mxu0
      %v981 = vadd.f32 %v901, %v980
      %v982 = vpop.f32.mrb[0].mxu0
      %v983 = vadd.f32 %v905, %v982
      %984 = vmatprep.mubr.f32.mxu0 0.0
      %985 = vmatmul.mubr.f32.gmra.mrb[0].mxu0 %v862
      %v986 = vpop.f32.mrb[0].mxu0
      %v987 = vadd.f32 %v901, %v986
      %v988 = vpop.f32.mrb[0].mxu0
      %v989 = vadd.f32 %v905, %v988
      %990 = vmatprep.mubr.f32.mxu0 0.0
      %991 = vmatmul.mubr.f32.gmra.mrb[0].mxu0 %v863
      %v992 = vpop.f32.mrb[0].mxu0
      %v993 = vadd.f32 %v901, %v992
      %v994 = vpop.f32.mrb[0].mxu0
      %v995 = vadd.f32 %v905, %v994
      %996 = vdwg.mxu0
      %v997 = vmax.f32 %v975, 0.0
      %v998 = vmax.f32 %v977, 0.0
      %v999 = vmax.f32 %v981, 0.0
      %v1000 = vmax.f32 %v983, 0.0
      %v1001 = vmax.f32 %v987, 0.0
      %v1002 = vmax.f32 %v989, 0.0
      %v1003 = vmax.f32 %v993, 0.0
      %v1004 = vmax.f32 %v995, 0.0
      %v1005 = vld [vmem:[%s9] sm:$0xff]
      %v1006 = vld [vmem:[%s9 + $0x8] sm:$0xff]
      %v1007 = vld [vmem:[%s9 + $0x10] sm:$0xff]
      %v1008 = vld [vmem:[%s9 + $0x18] sm:$0xff]
      %v1009 = vld [vmem:[%s9 + $0x20] sm:$0xff]
      %v1010 = vld [vmem:[%s9 + $0x28] sm:$0xff]
      %v1011 = vld [vmem:[%s9 + $0x30] sm:$0xff]
      %v1012 = vld [vmem:[%s9 + $0x38] sm:$0xff]
      %v1013 = vld [vmem:[%s9 + $0x40] sm:$0xff]
      %v1014 = vld [vmem:[%s9 + $0x48] sm:$0xff]
      %v1015 = vld [vmem:[%s9 + $0x50] sm:$0xff]
      %v1016 = vld [vmem:[%s9 + $0x58] sm:$0xff]
      %v1017 = vld [vmem:[%s9 + $0x60] sm:$0xff]
      %v1018 = vld [vmem:[%s9 + $0x68] sm:$0xff]
      %v1019 = vld [vmem:[%s9 + $0x70] sm:$0xff]
      %v1020 = vld [vmem:[%s9 + $0x78] sm:$0xff]
      %v1021 = vld [vmem:[%s9 + $0x80] sm:$0xff]
      %v1022 = vld [vmem:[%s9 + $0x88] sm:$0xff]
      %v1023 = vld [vmem:[%s9 + $0x90] sm:$0xff]
      %v1024 = vld [vmem:[%s9 + $0x98] sm:$0xff]
      %v1025 = vld [vmem:[%s9 + $0xa0] sm:$0xff]
      %v1026 = vld [vmem:[%s9 + $0xa8] sm:$0xff]
      %v1027 = vld [vmem:[%s9 + $0xb0] sm:$0xff]
      %v1028 = vld [vmem:[%s9 + $0xb8] sm:$0xff]
      %v1029 = vld [vmem:[%s9 + $0xc0] sm:$0xff]
      %v1030 = vld [vmem:[%s9 + $0xc8] sm:$0xff]
      %v1031 = vld [vmem:[%s9 + $0xd0] sm:$0xff]
      %v1032 = vld [vmem:[%s9 + $0xd8] sm:$0xff]
      %v1033 = vld [vmem:[%s9 + $0xe0] sm:$0xff]
      %v1034 = vld [vmem:[%s9 + $0xe8] sm:$0xff]
      %v1035 = vld [vmem:[%s9 + $0xf0] sm:$0xff]
      %v1036 = vld [vmem:[%s9 + $0xf8] sm:$0xff]
      %v1037 = vld [vmem:[%s9 + $0x100] sm:$0xff]
      %v1038 = vld [vmem:[%s9 + $0x108] sm:$0xff]
      %v1039 = vld [vmem:[%s9 + $0x110] sm:$0xff]
      %v1040 = vld [vmem:[%s9 + $0x118] sm:$0xff]
      %v1041 = vld [vmem:[%s9 + $0x120] sm:$0xff]
      %v1042 = vld [vmem:[%s9 + $0x128] sm:$0xff]
      %v1043 = vld [vmem:[%s9 + $0x130] sm:$0xff]
      %v1044 = vld [vmem:[%s9 + $0x138] sm:$0xff]
      %v1045 = vld [vmem:[%s9 + $0x140] sm:$0xff]
      %v1046 = vld [vmem:[%s9 + $0x148] sm:$0xff]
      %v1047 = vld [vmem:[%s9 + $0x150] sm:$0xff]
      %v1048 = vld [vmem:[%s9 + $0x158] sm:$0xff]
      %v1049 = vld [vmem:[%s9 + $0x160] sm:$0xff]
      %v1050 = vld [vmem:[%s9 + $0x168] sm:$0xff]
      %v1051 = vld [vmem:[%s9 + $0x170] sm:$0xff]
      %v1052 = vld [vmem:[%s9 + $0x178] sm:$0xff]
      %v1053 = vld [vmem:[%s9 + $0x180] sm:$0xff]
      %v1054 = vld [vmem:[%s9 + $0x188] sm:$0xff]
      %v1055 = vld [vmem:[%s9 + $0x190] sm:$0xff]
      %v1056 = vld [vmem:[%s9 + $0x198] sm:$0xff]
      %v1057 = vld [vmem:[%s9 + $0x1a0] sm:$0xff]
      %v1058 = vld [vmem:[%s9 + $0x1a8] sm:$0xff]
      %v1059 = vld [vmem:[%s9 + $0x1b0] sm:$0xff]
      %v1060 = vld [vmem:[%s9 + $0x1b8] sm:$0xff]
      %v1061 = vld [vmem:[%s9 + $0x1c0] sm:$0xff]
      %v1062 = vld [vmem:[%s9 + $0x1c8] sm:$0xff]
      %v1063 = vld [vmem:[%s9 + $0x1d0] sm:$0xff]
      %v1064 = vld [vmem:[%s9 + $0x1d8] sm:$0xff]
      %v1065 = vld [vmem:[%s9 + $0x1e0] sm:$0xff]
      %v1066 = vld [vmem:[%s9 + $0x1e8] sm:$0xff]
      %v1067 = vld [vmem:[%s9 + $0x1f0] sm:$0xff]
      %v1068 = vld [vmem:[%s9 + $0x1f8] sm:$0xff]
      %v1069 = vld [vmem:[%s10] sm:$0x3]
      %v1071 = vlaneseq
      %v1072 = vshrl.u32 %v1071, 7
      %v1073 = vsub.s32 0, %v1072
      %v1074 = vrot.slane %v1069, %v1073
      %v1075 = vlaneseq
      %v1076 = vshrl.u32 %v1075, 7
      %v1077 = vsub.s32 1, %v1076
      %v1078 = vrot.slane %v1069, %v1077
      %1081 = vmatprep.subr.mxu0 %v1006
      %1082 = vmatpush1.msra.mxu0 %v1005
      %1083 = vmatprep.subr.mxu0 %v1008
      %1084 = vmatpush1.msra.mxu0 %v1007
      %1085 = vmatprep.subr.mxu0 %v1010
      %1086 = vmatpush1.msra.mxu0 %v1009
      %1087 = vmatprep.subr.mxu0 %v1012
      %1088 = vmatpush1.msra.mxu0 %v1011
      %1089 = vmatprep.subr.mxu0 %v1014
      %1090 = vmatpush1.msra.mxu0 %v1013
      %1091 = vmatprep.subr.mxu0 %v1016
      %1092 = vmatpush1.msra.mxu0 %v1015
      %1093 = vmatprep.subr.mxu0 %v1018
      %1094 = vmatpush1.msra.mxu0 %v1017
      %1095 = vmatprep.subr.mxu0 %v1020
      %1096 = vmatpush1.msra.mxu0 %v1019
      %1097 = vmatprep.subr.mxu0 %v1022
      %1098 = vmatpush1.msra.mxu0 %v1021
      %1099 = vmatprep.subr.mxu0 %v1024
      %1100 = vmatpush1.msra.mxu0 %v1023
      %1101 = vmatprep.subr.mxu0 %v1026
      %1102 = vmatpush1.msra.mxu0 %v1025
      %1103 = vmatprep.subr.mxu0 %v1028
      %1104 = vmatpush1.msra.mxu0 %v1027
      %1105 = vmatprep.subr.mxu0 %v1030
      %1106 = vmatpush1.msra.mxu0 %v1029
      %1107 = vmatprep.subr.mxu0 %v1032
      %1108 = vmatpush1.msra.mxu0 %v1031
      %1109 = vmatprep.subr.mxu0 %v1034
      %1110 = vmatpush1.msra.mxu0 %v1033
      %1111 = vmatprep.subr.mxu0 %v1036
      %1112 = vmatpush1.msra.mxu0 %v1035
      %1113 = vmatprep.subr.mxu0 %v1038
      %1114 = vmatpush1.msra.mxu0 %v1037
      %1115 = vmatprep.subr.mxu0 %v1040
      %1116 = vmatpush1.msra.mxu0 %v1039
      %1117 = vmatprep.subr.mxu0 %v1042
      %1118 = vmatpush1.msra.mxu0 %v1041
      %1119 = vmatprep.subr.mxu0 %v1044
      %1120 = vmatpush1.msra.mxu0 %v1043
      %1121 = vmatprep.subr.mxu0 %v1046
      %1122 = vmatpush1.msra.mxu0 %v1045
      %1123 = vmatprep.subr.mxu0 %v1048
      %1124 = vmatpush1.msra.mxu0 %v1047
      %1125 = vmatprep.subr.mxu0 %v1050
      %1126 = vmatpush1.msra.mxu0 %v1049
      %1127 = vmatprep.subr.mxu0 %v1052
      %1128 = vmatpush1.msra.mxu0 %v1051
      %1129 = vmatprep.subr.mxu0 %v1054
      %1130 = vmatpush1.msra.mxu0 %v1053
      %1131 = vmatprep.subr.mxu0 %v1056
      %1132 = vmatpush1.msra.mxu0 %v1055
      %1133 = vmatprep.subr.mxu0 %v1058
      %1134 = vmatpush1.msra.mxu0 %v1057
      %1135 = vmatprep.subr.mxu0 %v1060
      %1136 = vmatpush1.msra.mxu0 %v1059
      %1137 = vmatprep.subr.mxu0 %v1062
      %1138 = vmatpush1.msra.mxu0 %v1061
      %1139 = vmatprep.subr.mxu0 %v1064
      %1140 = vmatpush1.msra.mxu0 %v1063
      %1141 = vmatprep.subr.mxu0 %v1066
      %1142 = vmatpush1.msra.mxu0 %v1065
      %1143 = vmatprep.subr.mxu0 %v1068
      %1144 = vmatpush1.msra.mxu0 %v1067
      %1145 = vmatprep.mubr.f32.mxu0 %v998
      %1146 = vmatmul.mubr.f32.gmra.mrb[0].mxu0 %v997
      %v1147 = vpop.f32.mrb[0].mxu0
      %v1148 = vadd.f32 %v1074, %v1147
      %v1149 = vpop.f32.mrb[0].mxu0
      %v1150 = vadd.f32 %v1078, %v1149
      %1151 = vmatprep.mubr.f32.mxu0 %v1000
      %1152 = vmatmul.mubr.f32.gmra.mrb[0].mxu0 %v999
      %v1153 = vpop.f32.mrb[0].mxu0
      %v1154 = vadd.f32 %v1074, %v1153
      %v1155 = vpop.f32.mrb[0].mxu0
      %v1156 = vadd.f32 %v1078, %v1155
      %1157 = vmatprep.mubr.f32.mxu0 %v1002
      %1158 = vmatmul.mubr.f32.gmra.mrb[0].mxu0 %v1001
      %v1159 = vpop.f32.mrb[0].mxu0
      %v1160 = vadd.f32 %v1074, %v1159
      %v1161 = vpop.f32.mrb[0].mxu0
      %v1162 = vadd.f32 %v1078, %v1161
      %1163 = vmatprep.mubr.f32.mxu0 %v1004
      %1164 = vmatmul.mubr.f32.gmra.mrb[0].mxu0 %v1003
      %v1165 = vpop.f32.mrb[0].mxu0
      %v1166 = vadd.f32 %v1074, %v1165
      %v1167 = vpop.f32.mrb[0].mxu0
      %v1168 = vadd.f32 %v1078, %v1167
      %1169 = vdwg.mxu0
      %1170 = vst [vmem:[%s426] sm:$0xff] %v588
      %1171 = vst [vmem:[%s426 + $0x10] sm:$0xff] %v589
      %1172 = vst [vmem:[%s426 + $0x20] sm:$0xff] %v590
      %1173 = vst [vmem:[%s426 + $0x30] sm:$0xff] %v591
      %1174 = vst [vmem:[%s426 + $0x8] sm:$0xff] %v592
      %1175 = vst [vmem:[%s426 + $0x18] sm:$0xff] %v593
      %1176 = vst [vmem:[%s426 + $0x28] sm:$0xff] %v594
      %1177 = vst [vmem:[%s426 + $0x38] sm:$0xff] %v595
      %1178 = vst [vmem:[%s433] sm:$0xff] %v822
      %1179 = vst [vmem:[%s433 + $0x20] sm:$0xff] %v827
      %1180 = vst [vmem:[%s433 + $0x40] sm:$0xff] %v832
      %1181 = vst [vmem:[%s433 + $0x60] sm:$0xff] %v837
      %1182 = vst [vmem:[%s433 + $0x8] sm:$0xff] %v842
      %1183 = vst [vmem:[%s433 + $0x28] sm:$0xff] %v847
      %1184 = vst [vmem:[%s433 + $0x48] sm:$0xff] %v852
      %1185 = vst [vmem:[%s433 + $0x68] sm:$0xff] %v857
      %1186 = vst [vmem:[%s433 + $0x10] sm:$0xff] %v1148
      %1187 = vst [vmem:[%s433 + $0x18] sm:$0xff] %v1150
      %1188 = vst [vmem:[%s433 + $0x30] sm:$0xff] %v1154
      %1189 = vst [vmem:[%s433 + $0x38] sm:$0xff] %v1156
      %1190 = vst [vmem:[%s433 + $0x50] sm:$0xff] %v1160
      %1191 = vst [vmem:[%s433 + $0x58] sm:$0xff] %v1162
      %1192 = vst [vmem:[%s433 + $0x70] sm:$0xff] %v1166
      %1193 = vst [vmem:[%s433 + $0x78] sm:$0xff] %v1168
      %s1194 = smul.u32 4, %s24
      %p1195 = scmp.lt.s32.totalorder %s1194, 7
      %s1196 = scalar_select %p1195, %s1194, 7
      %s1197 = smul.addr %s1196, 2
      %s1198 = smul.addr %s1197, 8
      %s1199 = scalar_lea.vmem %s11, %s1198
      %s1200 = smul.u32 4, %s24
      %p1201 = scmp.lt.s32.totalorder %s1200, 7
      %s1202 = scalar_select %p1201, %s1200, 7
      %s1203 = smul.addr %s1202, 4
      %s1204 = smul.addr %s1203, 8
      %s1205 = scalar_lea.vmem %s12, %s1204
      // Predicated region
      $region65: #{kano_siams_forward.1} parent=63 // pred_check
        %p1206 = pneg %p278
      $region66: #{kano_siams_forward.1} parent=63 // pred_check_branch
        %1208 = sbr.rel (%p1206) target = $region68
      $region67: #{kano_siams_forward.1} parent=63 // pred_region
        %s1209 = smul.u32 4, %s24
      $region68: #{kano_siams_forward.1} parent=63 // pred_fallthru
        _
      // Predicated region
      $region69: #{kano_siams_forward.1} parent=63 // pred_check
        %p1210 = pneg %p304
      $region70: #{kano_siams_forward.1} parent=63 // pred_check_branch
        %1212 = sbr.rel (%p1210) target = $region72
      $region71: #{kano_siams_forward.1} parent=63 // pred_region
        %s1213 = smul.u32 4, %s24
      $region72: #{kano_siams_forward.1} parent=63 // pred_fallthru
        _
    $region64: #{kano_siams_forward.1} parent=5 // pred_fallthru
      _
    %p1214 = scmp.le.s32.totalorder 2, %s19
    // Predicated region
    $region73: #{kano_siams_forward.1} parent=5 // pred_check
      %p1215 = pneg %p1214
    $region74: #{kano_siams_forward.1} parent=5 // pred_check_branch
      %1217 = sbr.rel (%p1215) target = $region76
    $region75: #{kano_siams_forward.1} parent=5 // pred_region
      %s1218 = ssub.s32 %s19, 2
      // Predicated region
      $region77: #{kano_siams_forward.1} parent=75 // pred_check
        %p1219 = pneg %p284
      $region78: #{kano_siams_forward.1} parent=75 // pred_check_branch
        %1221 = sbr.rel (%p1219) target = $region80
      $region79: #{kano_siams_forward.1} parent=75 // pred_region
        %s1222 = smul.u32 4, %s25
        %p1223 = scmp.lt.s32.totalorder %s1222, 7
        %s1224 = scalar_select %p1223, %s1222, 7
        %s1225 = smul.addr %s1224, 2
        %s1226 = smul.addr %s1225, 8
        %s1227 = scalar_lea.vmem %s11, %s1226
      $region80: #{kano_siams_forward.1} parent=75 // pred_fallthru
        _
      // Predicated region
      $region81: #{kano_siams_forward.1} parent=75 // pred_check
        %p1228 = pneg %p310
      $region82: #{kano_siams_forward.1} parent=75 // pred_check_branch
        %1230 = sbr.rel (%p1228) target = $region84
      $region83: #{kano_siams_forward.1} parent=75 // pred_region
        %s1231 = smul.u32 4, %s25
        %p1232 = scmp.lt.s32.totalorder %s1231, 7
        %s1233 = scalar_select %p1232, %s1231, 7
        %s1234 = smul.addr %s1233, 4
        %s1235 = smul.addr %s1234, 8
        %s1236 = scalar_lea.vmem %s12, %s1235
      $region84: #{kano_siams_forward.1} parent=75 // pred_fallthru
        _
    $region76: #{kano_siams_forward.1} parent=5 // pred_fallthru
      _
  $region6: #{kano_siams_forward.1} parent=0 // loop_footer
    %s23 = sadd.s32 1, %s19
  $region7: #{kano_siams_forward.1} parent=0 // loop_footer_branch
    %18 = sbr.rel target = $region3
  $region8: #{kano_siams_forward.1} parent=0 // loop_exit
    _

</llo_original>
